<compile_context>
chip_gen: v5e
topology: v5e:2x2
jax: 0.10.0
libtpu: 0.0.40
codegen_flags: <defaults>
</compile_context>

<pallas_src>
import numpy as np
import jax
import jax.numpy as jnp
from jax.experimental import pallas as pl
from jax.experimental.pallas import tpu as pltpu

LANE = 128  # TPU lane grain; all feature dims padded to a multiple of this


def ru(x, m):
    return ((x + m - 1) // m) * m


def f32_dot(a, b):
    return jnp.dot(a, b, preferred_element_type=jnp.float32)


# ---------------------------------------------------------------------------
# Fused Pallas kernel: the whole N-BEATS block chain in one call
# ---------------------------------------------------------------------------
def make_fused_kernel(plan, c_pad):
    """plan: per-block dicts {'kind': 'G'|'S'|'T', 'n_layers': int}.

    Kernel ref signature: x_ref, <per-block packed slabs...>, out_ref
    Per-block slab order (must match pack_blocks):
        W0 (C_pad,U_pad), [W_rest (L-1,U_pad,U_pad) if L>1], Bias_fc (L,U_pad),
        Wtheta (U_pad,TD), Basis (TD, C_pad+P_pad), [bias_bf (1,C_pad+P_pad) G only]
    """
    n_blocks = len(plan)

    def kernel(x_ref, *refs):
        out_ref = refs[-1]
        w = refs[:-1]
        x = x_ref[...]                                      # (TB, C_pad) f32
        out_ref[...] = jnp.zeros(out_ref.shape, out_ref.dtype)  # accumulate in VMEM

        idx = 0
        for bi, blk in enumerate(plan):
            is_last = bi == n_blocks - 1
            L = blk["n_layers"]

            w0 = w[idx]; idx += 1
            wr = None
            if L > 1:
                wr = w[idx]; idx += 1
            bfc = w[idx]; idx += 1
            wt = w[idx]; idx += 1
            basis = w[idx]; idx += 1
            bias_bf = None
            if blk["kind"] == "G":
                bias_bf = w[idx]; idx += 1

            # FC stack: Linear + ReLU, L times (padded cols stay exactly 0)
            h = jnp.maximum(f32_dot(x, w0[...]) + bfc[0:1, :], 0.0)
            for l in range(1, L):
                h = jnp.maximum(f32_dot(h, wr[l - 1]) + bfc[l:l + 1, :], 0.0)

            # Fused theta projection (G: theta_b ‖ theta_f in one matmul)
            theta = f32_dot(h, wt[...])
            if blk["kind"] == "G":
                theta = jnp.maximum(theta, 0.0)

            # Fused basis expansion: one MXU push gives backcast ‖ forecast
            bc_fc = f32_dot(theta, basis[...])
            if bias_bf is not None:
                bc_fc = bc_fc + bias_bf[...]

            out_ref[...] += bc_fc[:, c_pad:]        # forecast half (lane-aligned)
            if not is_last:                         # last block's residual unused
                x = x - bc_fc[:, :c_pad]            # backcast half

    return kernel


# ---------------------------------------------------------------------------
# Pack the unpadded block parameters into padded, fused, per-block slabs
# ---------------------------------------------------------------------------
def pack_blocks(blocks, c_pad, p_pad):
    plan, tensors = [], []
    for blk in blocks:
        kind = blk["kind"]
        L = len(blk["fc_w"])
        C = blk["fc_w"][0].shape[0]
        units = blk["fc_w"][0].shape[1]
        u_pad = ru(units, LANE)

        # FC stack: first-layer weight, stacked remaining weights, stacked biases
        w0 = np.zeros((c_pad, u_pad), np.float32)
        w0[:C, :units] = blk["fc_w"][0]
        tensors.append(jnp.asarray(w0))
        if L > 1:
            wr = np.zeros((L - 1, u_pad, u_pad), np.float32)
            for l in range(1, L):
                wr[l - 1, :units, :units] = blk["fc_w"][l]
            tensors.append(jnp.asarray(wr))
        bfc = np.zeros((L, u_pad), np.float32)
        for l in range(L):
            bfc[l, :units] = blk["fc_b"][l]
        tensors.append(jnp.asarray(bfc))

        if kind == "G":
            td = blk["wtb"].shape[1]
            td_pad = ru(td, LANE // 2)            # 2*td_pad is a lane multiple
            wt = np.zeros((u_pad, 2 * td_pad), np.float32)
            wt[:units, :td] = blk["wtb"]
            wt[:units, td_pad:td_pad + td] = blk["wtf"]
            basis = np.zeros((2 * td_pad, c_pad + p_pad), np.float32)
            basis[:td, :blk["bas_b"].shape[1]] = blk["bas_b"]
            basis[td_pad:td_pad + td,
                  c_pad:c_pad + blk["bas_f"].shape[1]] = blk["bas_f"]
            bias = np.zeros((1, c_pad + p_pad), np.float32)
            bias[0, :blk["bias_b"].shape[0]] = blk["bias_b"]
            bias[0, c_pad:c_pad + blk["bias_f"].shape[0]] = blk["bias_f"]
            tensors += [jnp.asarray(wt), jnp.asarray(basis), jnp.asarray(bias)]
        else:   # 'S' / 'T' — shared theta projection
            td = blk["wt"].shape[1]
            td_pad = ru(td, LANE)
            wt = np.zeros((u_pad, td_pad), np.float32)
            wt[:units, :td] = blk["wt"]
            basis = np.zeros((td_pad, c_pad + p_pad), np.float32)
            basis[:td, :blk["bas_b"].shape[1]] = blk["bas_b"]
            basis[:td, c_pad:c_pad + blk["bas_f"].shape[1]] = blk["bas_f"]
            tensors += [jnp.asarray(wt), jnp.asarray(basis)]

        plan.append({"kind": kind, "n_layers": L})
    return plan, tensors


# ---------------------------------------------------------------------------
# Wrapper: one pallas_call for the whole network
# ---------------------------------------------------------------------------
def nbeats_forward(past_target, blocks, *, batch_tile=None):
    B, C = past_target.shape
    P = blocks[0]["forecast_length"]
    c_pad = ru(C, LANE)
    p_pad = ru(P, LANE)

    plan, tensors = pack_blocks(blocks, c_pad, p_pad)

    TB = B if batch_tile is None else min(batch_tile, B)
    assert B % TB == 0, "batch must be a multiple of the batch tile"

    x_pad = jnp.pad(past_target.astype(jnp.float32), ((0, 0), (0, c_pad - C)))

    def const_map(ndim):
        return lambda i: (0,) * ndim

    # x / forecast stream over the batch grid; weight slabs use constant block
    # indices, so Pallas DMAs them once and keeps them VMEM-resident.
    x_spec = pl.BlockSpec((TB, c_pad), lambda i: (i, 0))
    weight_specs = [pl.BlockSpec(t.shape, const_map(t.ndim)) for t in tensors]
    out_spec = pl.BlockSpec((TB, p_pad), lambda i: (i, 0))

    weight_bytes = sum(int(t.size) * t.dtype.itemsize for t in tensors)
    io_bytes = (TB * c_pad + TB * p_pad) * 4
    vmem_limit = min(2 * weight_bytes + 4 * io_bytes + (8 << 20), 64 << 20)

    grid_spec = pltpu.PrefetchScalarGridSpec(
        num_scalar_prefetch=0,
        grid=(B // TB,),
        in_specs=[x_spec] + weight_specs,
        out_specs=out_spec,
    )
    out_pad = pl.pallas_call(
        make_fused_kernel(plan, c_pad),
        out_shape=jax.ShapeDtypeStruct((B, p_pad), jnp.float32),
        grid_spec=grid_spec,
        compiler_params=pltpu.CompilerParams(
            dimension_semantics=("parallel",),
            vmem_limit_bytes=int(vmem_limit),
        ),
    )(x_pad, *tensors)
    return out_pad[:, :P]


# ---------------------------------------------------------------------------
# Parameter construction (mirrors the torch __init__ shapes, deterministic)
# ---------------------------------------------------------------------------
def linspace_np(backcast_length, forecast_length):
    lin = np.linspace(-backcast_length, forecast_length,
                      backcast_length + forecast_length, dtype=np.float32)
    return lin[:backcast_length], lin[backcast_length:]


def init_linear(key, fan_in, fan_out, scale=0.05, bias=True):
    kw, kb = jax.random.split(key)
    w = np.asarray(scale * jax.random.normal(kw, (fan_in, fan_out), jnp.float32))
    b = (np.asarray(scale * jax.random.normal(kb, (fan_out,), jnp.float32))
         if bias else None)
    return w, b


def build_block(key, kind, units, thetas_dim, n_layers, backcast_len, forecast_len):
    keys = jax.random.split(key, n_layers + 4)
    fc_w, fc_b = [], []
    in_dim = backcast_len
    for l in range(n_layers):
        w, b = init_linear(keys[l], in_dim, units)
        fc_w.append(w); fc_b.append(b)
        in_dim = units

    if kind == "S":                       # nb_harmonics=None -> thetas = P
        thetas_dim = forecast_len

    b_ls, f_ls = linspace_np(backcast_len, forecast_len)
    blk = dict(kind=kind, fc_w=fc_w, fc_b=fc_b, forecast_length=forecast_len)

    if kind == "G":
        wtb, _ = init_linear(keys[n_layers], units, thetas_dim, bias=False)
        wtf, _ = init_linear(keys[n_layers + 1], units, thetas_dim, bias=False)
        bas_b, bias_b = init_linear(keys[n_layers + 2], thetas_dim, backcast_len)
        bas_f, bias_f = init_linear(keys[n_layers + 3], thetas_dim, forecast_len)
        blk.update(wtb=wtb, wtf=wtf, bas_b=bas_b, bas_f=bas_f,
                   bias_b=bias_b, bias_f=bias_f)
    else:
        wt, _ = init_linear(keys[n_layers], units, thetas_dim, bias=False)
        if kind == "S":
            p1 = thetas_dim // 2
            p2 = thetas_dim // 2 if thetas_dim % 2 == 0 else thetas_dim // 2 + 1
            bas_b = np.concatenate(
                [np.stack([np.cos(2 * np.pi * i * b_ls) for i in range(p1)]),
                 np.stack([np.sin(2 * np.pi * i * b_ls) for i in range(p2)])], 0)
            bas_f = np.concatenate(
                [np.stack([np.cos(2 * np.pi * i * f_ls) for i in range(p1)]),
                 np.stack([np.sin(2 * np.pi * i * f_ls) for i in range(p2)])], 0)
        else:  # 'T' trend
            bas_b = np.stack([b_ls ** i for i in range(thetas_dim)])
            bas_f = np.stack([f_ls ** i for i in range(thetas_dim)])
        blk.update(wt=wt, bas_b=np.asarray(bas_b, np.float32),
                   bas_f=np.asarray(bas_f, np.float32))
    return blk


# ---------------------------------------------------------------------------
# Pure-f32, torch-equivalent reference forward (unpadded, unfused)
# ---------------------------------------------------------------------------
def reference_forward(past_target, blocks):
    hp = jax.lax.Precision.HIGHEST
    x = past_target.astype(jnp.float32)
    forecast = jnp.zeros((x.shape[0], blocks[0]["forecast_length"]), jnp.float32)
    for bi, blk in enumerate(blocks):
        h = x
        for W, b in zip(blk["fc_w"], blk["fc_b"]):
            h = jnp.maximum(jnp.dot(h, W, precision=hp) + b, 0.0)
        if blk["kind"] == "G":
            tb = jnp.maximum(jnp.dot(h, blk["wtb"], precision=hp), 0.0)
            tf = jnp.maximum(jnp.dot(h, blk["wtf"], precision=hp), 0.0)
            back = jnp.dot(tb, blk["bas_b"], precision=hp) + blk["bias_b"]
            fore = jnp.dot(tf, blk["bas_f"], precision=hp) + blk["bias_f"]
        else:
            th = jnp.dot(h, blk["wt"], precision=hp)
            back = jnp.dot(th, blk["bas_b"], precision=hp)
            fore = jnp.dot(th, blk["bas_f"], precision=hp)
        forecast = forecast + fore
        if bi < len(blocks) - 1:           # last block's backcast is unused
            x = x - back
    return forecast


# ---------------------------------------------------------------------------
if __name__ == "__main__":
    key = jax.random.PRNGKey(0)

    batch = 16
    context_length = 16
    prediction_length = 8
    num_stacks = 3
    stack_types = ["T", "S", "G"]
    widths = [32, 32, 32]
    num_blocks = [1, 2, 1]
    num_block_layers = [2, 2, 2]
    expansion_coefficient_lengths = [3, prediction_length, 4]

    key, xkey = jax.random.split(key)
    past_target = jax.random.normal(xkey, (batch, context_length), jnp.float32)

    blocks = []
    for sid in range(num_stacks):
        for _bid in range(num_blocks[sid]):
            key, bkey = jax.random.split(key)
            blocks.append(
                build_block(bkey, stack_types[sid], widths[sid],
                            expansion_coefficient_lengths[sid],
                            num_block_layers[sid],
                            context_length, prediction_length))

    forecast = jax.block_until_ready(nbeats_forward(past_target, blocks))
    ref = jax.block_until_ready(reference_forward(past_target, blocks))
    np.testing.assert_allclose(np.asarray(forecast), np.asarray(ref),
                               rtol=5e-3, atol=5e-4)

    print("KERNEL_OK")
</pallas_src>

<mosaic_0001>
module attributes {stable_mosaic.version = 11 : i64} {
  func.func @kernel(%arg0: i32, %arg1: memref<16x128xf32, #tpu.memory_space<vmem>>, %arg2: memref<128x128xf32, #tpu.memory_space<vmem>>, %arg3: memref<1x128x128xf32, #tpu.memory_space<vmem>>, %arg4: memref<2x128xf32, #tpu.memory_space<vmem>>, %arg5: memref<128x128xf32, #tpu.memory_space<vmem>>, %arg6: memref<128x256xf32, #tpu.memory_space<vmem>>, %arg7: memref<128x128xf32, #tpu.memory_space<vmem>>, %arg8: memref<1x128x128xf32, #tpu.memory_space<vmem>>, %arg9: memref<2x128xf32, #tpu.memory_space<vmem>>, %arg10: memref<128x128xf32, #tpu.memory_space<vmem>>, %arg11: memref<128x256xf32, #tpu.memory_space<vmem>>, %arg12: memref<128x128xf32, #tpu.memory_space<vmem>>, %arg13: memref<1x128x128xf32, #tpu.memory_space<vmem>>, %arg14: memref<2x128xf32, #tpu.memory_space<vmem>>, %arg15: memref<128x128xf32, #tpu.memory_space<vmem>>, %arg16: memref<128x256xf32, #tpu.memory_space<vmem>>, %arg17: memref<128x128xf32, #tpu.memory_space<vmem>>, %arg18: memref<1x128x128xf32, #tpu.memory_space<vmem>>, %arg19: memref<2x128xf32, #tpu.memory_space<vmem>>, %arg20: memref<128x128xf32, #tpu.memory_space<vmem>>, %arg21: memref<128x256xf32, #tpu.memory_space<vmem>>, %arg22: memref<1x256xf32, #tpu.memory_space<vmem>>, %arg23: memref<16x128xf32, #tpu.memory_space<vmem>>) attributes {dimension_semantics = [#tpu.dimension_semantics<parallel>], iteration_bounds = array<i64: 1>, scalar_prefetch = 0 : i64, scratch_operands = 0 : i64, tpu.core_type = #tpu.core_type<tc>, window_params = [{transform_indices = @transform_0, window_bounds = array<i64: 16, 128>}, {pipeline_mode = #tpu.pipeline_mode<synchronous>, transform_indices = @transform_1, window_bounds = array<i64: 128, 128>}, {pipeline_mode = #tpu.pipeline_mode<synchronous>, transform_indices = @transform_2, window_bounds = array<i64: 1, 128, 128>}, {pipeline_mode = #tpu.pipeline_mode<synchronous>, transform_indices = @transform_3, window_bounds = array<i64: 2, 128>}, {pipeline_mode = #tpu.pipeline_mode<synchronous>, transform_indices = @transform_4, window_bounds = array<i64: 128, 128>}, {pipeline_mode = #tpu.pipeline_mode<synchronous>, transform_indices = @transform_5, window_bounds = array<i64: 128, 256>}, {pipeline_mode = #tpu.pipeline_mode<synchronous>, transform_indices = @transform_6, window_bounds = array<i64: 128, 128>}, {pipeline_mode = #tpu.pipeline_mode<synchronous>, transform_indices = @transform_7, window_bounds = array<i64: 1, 128, 128>}, {pipeline_mode = #tpu.pipeline_mode<synchronous>, transform_indices = @transform_8, window_bounds = array<i64: 2, 128>}, {pipeline_mode = #tpu.pipeline_mode<synchronous>, transform_indices = @transform_9, window_bounds = array<i64: 128, 128>}, {pipeline_mode = #tpu.pipeline_mode<synchronous>, transform_indices = @transform_10, window_bounds = array<i64: 128, 256>}, {pipeline_mode = #tpu.pipeline_mode<synchronous>, transform_indices = @transform_11, window_bounds = array<i64: 128, 128>}, {pipeline_mode = #tpu.pipeline_mode<synchronous>, transform_indices = @transform_12, window_bounds = array<i64: 1, 128, 128>}, {pipeline_mode = #tpu.pipeline_mode<synchronous>, transform_indices = @transform_13, window_bounds = array<i64: 2, 128>}, {pipeline_mode = #tpu.pipeline_mode<synchronous>, transform_indices = @transform_14, window_bounds = array<i64: 128, 128>}, {pipeline_mode = #tpu.pipeline_mode<synchronous>, transform_indices = @transform_15, window_bounds = array<i64: 128, 256>}, {pipeline_mode = #tpu.pipeline_mode<synchronous>, transform_indices = @transform_16, window_bounds = array<i64: 128, 128>}, {pipeline_mode = #tpu.pipeline_mode<synchronous>, transform_indices = @transform_17, window_bounds = array<i64: 1, 128, 128>}, {pipeline_mode = #tpu.pipeline_mode<synchronous>, transform_indices = @transform_18, window_bounds = array<i64: 2, 128>}, {pipeline_mode = #tpu.pipeline_mode<synchronous>, transform_indices = @transform_19, window_bounds = array<i64: 128, 128>}, {pipeline_mode = #tpu.pipeline_mode<synchronous>, transform_indices = @transform_20, window_bounds = array<i64: 128, 256>}, {pipeline_mode = #tpu.pipeline_mode<synchronous>, transform_indices = @transform_21, window_bounds = array<i64: 1, 256>}, {transform_indices = @transform_22, window_bounds = array<i64: 16, 128>}]} {
    %c0 = arith.constant 0 : index
    %c0_0 = arith.constant 0 : index
    %0 = vector.load %arg1[%c0, %c0_0] : memref<16x128xf32, #tpu.memory_space<vmem>>, vector<16x128xf32>
    %cst = arith.constant 0.000000e+00 : f32
    %1 = vector.broadcast %cst : f32 to vector<16x128xf32>
    %c0_1 = arith.constant 0 : index
    %c0_2 = arith.constant 0 : index
    %2 = vector.load %arg23[%c0_1, %c0_2] : memref<16x128xf32, #tpu.memory_space<vmem>>, vector<16x128xf32>
    tpu.vector_store %arg23[%c0_1, %c0_2], %1 {strides = array<i32>} : memref<16x128xf32, #tpu.memory_space<vmem>>, vector<16x128xf32>,
    %c0_3 = arith.constant 0 : index
    %c0_4 = arith.constant 0 : index
    %3 = vector.load %arg2[%c0_3, %c0_4] : memref<128x128xf32, #tpu.memory_space<vmem>>, vector<128x128xf32>
    %cst_5 = arith.constant dense<0.000000e+00> : vector<16x128xf32>
    %4 = tpu.matmul %0, %3, %cst_5 {dimension_numbers = #tpu.dot_dimension_numbers<[1], [0], [0], [1], [0, 0, 1, 1], [], []>} : vector<16x128xf32>, vector<128x128xf32>, vector<16x128xf32> -> vector<16x128xf32>
    %c0_6 = arith.constant 0 : index
    %c0_7 = arith.constant 0 : index
    %5 = vector.load %arg4[%c0_6, %c0_7] : memref<2x128xf32, #tpu.memory_space<vmem>>, vector<1x128xf32>
    %6 = vector.broadcast %5 : vector<1x128xf32> to vector<16x128xf32>
    %7 = arith.addf %4, %6 : vector<16x128xf32>
    %cst_8 = arith.constant 0.000000e+00 : f32
    %8 = vector.broadcast %cst_8 : f32 to vector<16x128xf32>
    %9 = arith.maximumf %7, %8 : vector<16x128xf32>
    %c0_9 = arith.constant 0 : index
    %c0_10 = arith.constant 0 : index
    %c0_11 = arith.constant 0 : index
    %10 = vector.load %arg3[%c0_9, %c0_10, %c0_11] : memref<1x128x128xf32, #tpu.memory_space<vmem>>, vector<1x128x128xf32>
    %11 = vector.shape_cast %10 : vector<1x128x128xf32> to vector<128x128xf32>
    %cst_12 = arith.constant dense<0.000000e+00> : vector<16x128xf32>
    %12 = tpu.matmul %9, %11, %cst_12 {dimension_numbers = #tpu.dot_dimension_numbers<[1], [0], [0], [1], [0, 0, 1, 1], [], []>} : vector<16x128xf32>, vector<128x128xf32>, vector<16x128xf32> -> vector<16x128xf32>
    %c1 = arith.constant 1 : index
    %c0_13 = arith.constant 0 : index
    %13 = vector.load %arg4[%c1, %c0_13] : memref<2x128xf32, #tpu.memory_space<vmem>>, vector<1x128xf32>
    %14 = vector.broadcast %13 : vector<1x128xf32> to vector<16x128xf32>
    %15 = arith.addf %12, %14 : vector<16x128xf32>
    %cst_14 = arith.constant 0.000000e+00 : f32
    %16 = vector.broadcast %cst_14 : f32 to vector<16x128xf32>
    %17 = arith.maximumf %15, %16 : vector<16x128xf32>
    %c0_15 = arith.constant 0 : index
    %c0_16 = arith.constant 0 : index
    %18 = vector.load %arg5[%c0_15, %c0_16] : memref<128x128xf32, #tpu.memory_space<vmem>>, vector<128x128xf32>
    %cst_17 = arith.constant dense<0.000000e+00> : vector<16x128xf32>
    %19 = tpu.matmul %17, %18, %cst_17 {dimension_numbers = #tpu.dot_dimension_numbers<[1], [0], [0], [1], [0, 0, 1, 1], [], []>} : vector<16x128xf32>, vector<128x128xf32>, vector<16x128xf32> -> vector<16x128xf32>
    %c0_18 = arith.constant 0 : index
    %c0_19 = arith.constant 0 : index
    %20 = vector.load %arg6[%c0_18, %c0_19] : memref<128x256xf32, #tpu.memory_space<vmem>>, vector<128x256xf32>
    %cst_20 = arith.constant dense<0.000000e+00> : vector<16x256xf32>
    %21 = tpu.matmul %19, %20, %cst_20 {dimension_numbers = #tpu.dot_dimension_numbers<[1], [0], [0], [1], [0, 0, 1, 1], [], []>} : vector<16x128xf32>, vector<128x256xf32>, vector<16x256xf32> -> vector<16x256xf32>
    %c0_21 = arith.constant 0 : index
    %c0_22 = arith.constant 0 : index
    %22 = vector.load %arg23[%c0_21, %c0_22] : memref<16x128xf32, #tpu.memory_space<vmem>>, vector<16x128xf32>
    %23 = vector.extract_strided_slice %21 {offsets = [0, 128], sizes = [16, 128], strides = [1, 1]} : vector<16x256xf32> to vector<16x128xf32>
    %24 = arith.addf %22, %23 : vector<16x128xf32>
    %c0_23 = arith.constant 0 : index
    %c0_24 = arith.constant 0 : index
    %25 = vector.load %arg23[%c0_23, %c0_24] : memref<16x128xf32, #tpu.memory_space<vmem>>, vector<16x128xf32>
    tpu.vector_store %arg23[%c0_23, %c0_24], %24 {strides = array<i32>} : memref<16x128xf32, #tpu.memory_space<vmem>>, vector<16x128xf32>,
    %26 = vector.extract_strided_slice %21 {offsets = [0, 0], sizes = [16, 128], strides = [1, 1]} : vector<16x256xf32> to vector<16x128xf32>
    %27 = arith.subf %0, %26 : vector<16x128xf32>
    %c0_25 = arith.constant 0 : index
    %c0_26 = arith.constant 0 : index
    %28 = vector.load %arg7[%c0_25, %c0_26] : memref<128x128xf32, #tpu.memory_space<vmem>>, vector<128x128xf32>
    %cst_27 = arith.constant dense<0.000000e+00> : vector<16x128xf32>
    %29 = tpu.matmul %27, %28, %cst_27 {dimension_numbers = #tpu.dot_dimension_numbers<[1], [0], [0], [1], [0, 0, 1, 1], [], []>} : vector<16x128xf32>, vector<128x128xf32>, vector<16x128xf32> -> vector<16x128xf32>
    %c0_28 = arith.constant 0 : index
    %c0_29 = arith.constant 0 : index
    %30 = vector.load %arg9[%c0_28, %c0_29] : memref<2x128xf32, #tpu.memory_space<vmem>>, vector<1x128xf32>
    %31 = vector.broadcast %30 : vector<1x128xf32> to vector<16x128xf32>
    %32 = arith.addf %29, %31 : vector<16x128xf32>
    %cst_30 = arith.constant 0.000000e+00 : f32
    %33 = vector.broadcast %cst_30 : f32 to vector<16x128xf32>
    %34 = arith.maximumf %32, %33 : vector<16x128xf32>
    %c0_31 = arith.constant 0 : index
    %c0_32 = arith.constant 0 : index
    %c0_33 = arith.constant 0 : index
    %35 = vector.load %arg8[%c0_31, %c0_32, %c0_33] : memref<1x128x128xf32, #tpu.memory_space<vmem>>, vector<1x128x128xf32>
    %36 = vector.shape_cast %35 : vector<1x128x128xf32> to vector<128x128xf32>
    %cst_34 = arith.constant dense<0.000000e+00> : vector<16x128xf32>
    %37 = tpu.matmul %34, %36, %cst_34 {dimension_numbers = #tpu.dot_dimension_numbers<[1], [0], [0], [1], [0, 0, 1, 1], [], []>} : vector<16x128xf32>, vector<128x128xf32>, vector<16x128xf32> -> vector<16x128xf32>
    %c1_35 = arith.constant 1 : index
    %c0_36 = arith.constant 0 : index
    %38 = vector.load %arg9[%c1_35, %c0_36] : memref<2x128xf32, #tpu.memory_space<vmem>>, vector<1x128xf32>
    %39 = vector.broadcast %38 : vector<1x128xf32> to vector<16x128xf32>
    %40 = arith.addf %37, %39 : vector<16x128xf32>
    %cst_37 = arith.constant 0.000000e+00 : f32
    %41 = vector.broadcast %cst_37 : f32 to vector<16x128xf32>
    %42 = arith.maximumf %40, %41 : vector<16x128xf32>
    %c0_38 = arith.constant 0 : index
    %c0_39 = arith.constant 0 : index
    %43 = vector.load %arg10[%c0_38, %c0_39] : memref<128x128xf32, #tpu.memory_space<vmem>>, vector<128x128xf32>
    %cst_40 = arith.constant dense<0.000000e+00> : vector<16x128xf32>
    %44 = tpu.matmul %42, %43, %cst_40 {dimension_numbers = #tpu.dot_dimension_numbers<[1], [0], [0], [1], [0, 0, 1, 1], [], []>} : vector<16x128xf32>, vector<128x128xf32>, vector<16x128xf32> -> vector<16x128xf32>
    %c0_41 = arith.constant 0 : index
    %c0_42 = arith.constant 0 : index
    %45 = vector.load %arg11[%c0_41, %c0_42] : memref<128x256xf32, #tpu.memory_space<vmem>>, vector<128x256xf32>
    %cst_43 = arith.constant dense<0.000000e+00> : vector<16x256xf32>
    %46 = tpu.matmul %44, %45, %cst_43 {dimension_numbers = #tpu.dot_dimension_numbers<[1], [0], [0], [1], [0, 0, 1, 1], [], []>} : vector<16x128xf32>, vector<128x256xf32>, vector<16x256xf32> -> vector<16x256xf32>
    %c0_44 = arith.constant 0 : index
    %c0_45 = arith.constant 0 : index
    %47 = vector.load %arg23[%c0_44, %c0_45] : memref<16x128xf32, #tpu.memory_space<vmem>>, vector<16x128xf32>
    %48 = vector.extract_strided_slice %46 {offsets = [0, 128], sizes = [16, 128], strides = [1, 1]} : vector<16x256xf32> to vector<16x128xf32>
    %49 = arith.addf %47, %48 : vector<16x128xf32>
    %c0_46 = arith.constant 0 : index
    %c0_47 = arith.constant 0 : index
    %50 = vector.load %arg23[%c0_46, %c0_47] : memref<16x128xf32, #tpu.memory_space<vmem>>, vector<16x128xf32>
    tpu.vector_store %arg23[%c0_46, %c0_47], %49 {strides = array<i32>} : memref<16x128xf32, #tpu.memory_space<vmem>>, vector<16x128xf32>,
    %51 = vector.extract_strided_slice %46 {offsets = [0, 0], sizes = [16, 128], strides = [1, 1]} : vector<16x256xf32> to vector<16x128xf32>
    %52 = arith.subf %27, %51 : vector<16x128xf32>
    %c0_48 = arith.constant 0 : index
    %c0_49 = arith.constant 0 : index
    %53 = vector.load %arg12[%c0_48, %c0_49] : memref<128x128xf32, #tpu.memory_space<vmem>>, vector<128x128xf32>
    %cst_50 = arith.constant dense<0.000000e+00> : vector<16x128xf32>
    %54 = tpu.matmul %52, %53, %cst_50 {dimension_numbers = #tpu.dot_dimension_numbers<[1], [0], [0], [1], [0, 0, 1, 1], [], []>} : vector<16x128xf32>, vector<128x128xf32>, vector<16x128xf32> -> vector<16x128xf32>
    %c0_51 = arith.constant 0 : index
    %c0_52 = arith.constant 0 : index
    %55 = vector.load %arg14[%c0_51, %c0_52] : memref<2x128xf32, #tpu.memory_space<vmem>>, vector<1x128xf32>
    %56 = vector.broadcast %55 : vector<1x128xf32> to vector<16x128xf32>
    %57 = arith.addf %54, %56 : vector<16x128xf32>
    %cst_53 = arith.constant 0.000000e+00 : f32
    %58 = vector.broadcast %cst_53 : f32 to vector<16x128xf32>
    %59 = arith.maximumf %57, %58 : vector<16x128xf32>
    %c0_54 = arith.constant 0 : index
    %c0_55 = arith.constant 0 : index
    %c0_56 = arith.constant 0 : index
    %60 = vector.load %arg13[%c0_54, %c0_55, %c0_56] : memref<1x128x128xf32, #tpu.memory_space<vmem>>, vector<1x128x128xf32>
    %61 = vector.shape_cast %60 : vector<1x128x128xf32> to vector<128x128xf32>
    %cst_57 = arith.constant dense<0.000000e+00> : vector<16x128xf32>
    %62 = tpu.matmul %59, %61, %cst_57 {dimension_numbers = #tpu.dot_dimension_numbers<[1], [0], [0], [1], [0, 0, 1, 1], [], []>} : vector<16x128xf32>, vector<128x128xf32>, vector<16x128xf32> -> vector<16x128xf32>
    %c1_58 = arith.constant 1 : index
    %c0_59 = arith.constant 0 : index
    %63 = vector.load %arg14[%c1_58, %c0_59] : memref<2x128xf32, #tpu.memory_space<vmem>>, vector<1x128xf32>
    %64 = vector.broadcast %63 : vector<1x128xf32> to vector<16x128xf32>
    %65 = arith.addf %62, %64 : vector<16x128xf32>
    %cst_60 = arith.constant 0.000000e+00 : f32
    %66 = vector.broadcast %cst_60 : f32 to vector<16x128xf32>
    %67 = arith.maximumf %65, %66 : vector<16x128xf32>
    %c0_61 = arith.constant 0 : index
    %c0_62 = arith.constant 0 : index
    %68 = vector.load %arg15[%c0_61, %c0_62] : memref<128x128xf32, #tpu.memory_space<vmem>>, vector<128x128xf32>
    %cst_63 = arith.constant dense<0.000000e+00> : vector<16x128xf32>
    %69 = tpu.matmul %67, %68, %cst_63 {dimension_numbers = #tpu.dot_dimension_numbers<[1], [0], [0], [1], [0, 0, 1, 1], [], []>} : vector<16x128xf32>, vector<128x128xf32>, vector<16x128xf32> -> vector<16x128xf32>
    %c0_64 = arith.constant 0 : index
    %c0_65 = arith.constant 0 : index
    %70 = vector.load %arg16[%c0_64, %c0_65] : memref<128x256xf32, #tpu.memory_space<vmem>>, vector<128x256xf32>
    %cst_66 = arith.constant dense<0.000000e+00> : vector<16x256xf32>
    %71 = tpu.matmul %69, %70, %cst_66 {dimension_numbers = #tpu.dot_dimension_numbers<[1], [0], [0], [1], [0, 0, 1, 1], [], []>} : vector<16x128xf32>, vector<128x256xf32>, vector<16x256xf32> -> vector<16x256xf32>
    %c0_67 = arith.constant 0 : index
    %c0_68 = arith.constant 0 : index
    %72 = vector.load %arg23[%c0_67, %c0_68] : memref<16x128xf32, #tpu.memory_space<vmem>>, vector<16x128xf32>
    %73 = vector.extract_strided_slice %71 {offsets = [0, 128], sizes = [16, 128], strides = [1, 1]} : vector<16x256xf32> to vector<16x128xf32>
    %74 = arith.addf %72, %73 : vector<16x128xf32>
    %c0_69 = arith.constant 0 : index
    %c0_70 = arith.constant 0 : index
    %75 = vector.load %arg23[%c0_69, %c0_70] : memref<16x128xf32, #tpu.memory_space<vmem>>, vector<16x128xf32>
    tpu.vector_store %arg23[%c0_69, %c0_70], %74 {strides = array<i32>} : memref<16x128xf32, #tpu.memory_space<vmem>>, vector<16x128xf32>,
    %76 = vector.extract_strided_slice %71 {offsets = [0, 0], sizes = [16, 128], strides = [1, 1]} : vector<16x256xf32> to vector<16x128xf32>
    %77 = arith.subf %52, %76 : vector<16x128xf32>
    %c0_71 = arith.constant 0 : index
    %c0_72 = arith.constant 0 : index
    %78 = vector.load %arg17[%c0_71, %c0_72] : memref<128x128xf32, #tpu.memory_space<vmem>>, vector<128x128xf32>
    %cst_73 = arith.constant dense<0.000000e+00> : vector<16x128xf32>
    %79 = tpu.matmul %77, %78, %cst_73 {dimension_numbers = #tpu.dot_dimension_numbers<[1], [0], [0], [1], [0, 0, 1, 1], [], []>} : vector<16x128xf32>, vector<128x128xf32>, vector<16x128xf32> -> vector<16x128xf32>
    %c0_74 = arith.constant 0 : index
    %c0_75 = arith.constant 0 : index
    %80 = vector.load %arg19[%c0_74, %c0_75] : memref<2x128xf32, #tpu.memory_space<vmem>>, vector<1x128xf32>
    %81 = vector.broadcast %80 : vector<1x128xf32> to vector<16x128xf32>
    %82 = arith.addf %79, %81 : vector<16x128xf32>
    %cst_76 = arith.constant 0.000000e+00 : f32
    %83 = vector.broadcast %cst_76 : f32 to vector<16x128xf32>
    %84 = arith.maximumf %82, %83 : vector<16x128xf32>
    %c0_77 = arith.constant 0 : index
    %c0_78 = arith.constant 0 : index
    %c0_79 = arith.constant 0 : index
    %85 = vector.load %arg18[%c0_77, %c0_78, %c0_79] : memref<1x128x128xf32, #tpu.memory_space<vmem>>, vector<1x128x128xf32>
    %86 = vector.shape_cast %85 : vector<1x128x128xf32> to vector<128x128xf32>
    %cst_80 = arith.constant dense<0.000000e+00> : vector<16x128xf32>
    %87 = tpu.matmul %84, %86, %cst_80 {dimension_numbers = #tpu.dot_dimension_numbers<[1], [0], [0], [1], [0, 0, 1, 1], [], []>} : vector<16x128xf32>, vector<128x128xf32>, vector<16x128xf32> -> vector<16x128xf32>
    %c1_81 = arith.constant 1 : index
    %c0_82 = arith.constant 0 : index
    %88 = vector.load %arg19[%c1_81, %c0_82] : memref<2x128xf32, #tpu.memory_space<vmem>>, vector<1x128xf32>
    %89 = vector.broadcast %88 : vector<1x128xf32> to vector<16x128xf32>
    %90 = arith.addf %87, %89 : vector<16x128xf32>
    %cst_83 = arith.constant 0.000000e+00 : f32
    %91 = vector.broadcast %cst_83 : f32 to vector<16x128xf32>
    %92 = arith.maximumf %90, %91 : vector<16x128xf32>
    %c0_84 = arith.constant 0 : index
    %c0_85 = arith.constant 0 : index
    %93 = vector.load %arg20[%c0_84, %c0_85] : memref<128x128xf32, #tpu.memory_space<vmem>>, vector<128x128xf32>
    %cst_86 = arith.constant dense<0.000000e+00> : vector<16x128xf32>
    %94 = tpu.matmul %92, %93, %cst_86 {dimension_numbers = #tpu.dot_dimension_numbers<[1], [0], [0], [1], [0, 0, 1, 1], [], []>} : vector<16x128xf32>, vector<128x128xf32>, vector<16x128xf32> -> vector<16x128xf32>
    %cst_87 = arith.constant 0.000000e+00 : f32
    %95 = vector.broadcast %cst_87 : f32 to vector<16x128xf32>
    %96 = arith.maximumf %94, %95 : vector<16x128xf32>
    %c0_88 = arith.constant 0 : index
    %c0_89 = arith.constant 0 : index
    %97 = vector.load %arg21[%c0_88, %c0_89] : memref<128x256xf32, #tpu.memory_space<vmem>>, vector<128x256xf32>
    %cst_90 = arith.constant dense<0.000000e+00> : vector<16x256xf32>
    %98 = tpu.matmul %96, %97, %cst_90 {dimension_numbers = #tpu.dot_dimension_numbers<[1], [0], [0], [1], [0, 0, 1, 1], [], []>} : vector<16x128xf32>, vector<128x256xf32>, vector<16x256xf32> -> vector<16x256xf32>
    %c0_91 = arith.constant 0 : index
    %c0_92 = arith.constant 0 : index
    %99 = vector.load %arg22[%c0_91, %c0_92] : memref<1x256xf32, #tpu.memory_space<vmem>>, vector<1x256xf32>
    %100 = vector.broadcast %99 : vector<1x256xf32> to vector<16x256xf32>
    %101 = arith.addf %98, %100 : vector<16x256xf32>
    %c0_93 = arith.constant 0 : index
    %c0_94 = arith.constant 0 : index
    %102 = vector.load %arg23[%c0_93, %c0_94] : memref<16x128xf32, #tpu.memory_space<vmem>>, vector<16x128xf32>
    %103 = vector.extract_strided_slice %101 {offsets = [0, 128], sizes = [16, 128], strides = [1, 1]} : vector<16x256xf32> to vector<16x128xf32>
    %104 = arith.addf %102, %103 : vector<16x128xf32>
    %c0_95 = arith.constant 0 : index
    %c0_96 = arith.constant 0 : index
    %105 = vector.load %arg23[%c0_95, %c0_96] : memref<16x128xf32, #tpu.memory_space<vmem>>, vector<16x128xf32>
    tpu.vector_store %arg23[%c0_95, %c0_96], %104 {strides = array<i32>} : memref<16x128xf32, #tpu.memory_space<vmem>>, vector<16x128xf32>,
    return
  }
  func.func @transform_0(%arg0: i32) -> (i32, i32) {
    %c0_i32 = arith.constant 0 : i32
    %c0_i32_0 = arith.constant 0 : i32
    return %arg0, %c0_i32 : i32, i32
  }
  func.func @transform_1(%arg0: i32) -> (i32, i32) {
    %c0_i32 = arith.constant 0 : i32
    %c0_i32_0 = arith.constant 0 : i32
    %c0_i32_1 = arith.constant 0 : i32
    return %c0_i32, %c0_i32_0 : i32, i32
  }
  func.func @transform_2(%arg0: i32) -> (i32, i32, i32) {
    %c0_i32 = arith.constant 0 : i32
    %c0_i32_0 = arith.constant 0 : i32
    %c0_i32_1 = arith.constant 0 : i32
    %c0_i32_2 = arith.constant 0 : i32
    return %c0_i32, %c0_i32_0, %c0_i32_1 : i32, i32, i32
  }
  func.func @transform_3(%arg0: i32) -> (i32, i32) {
    %c0_i32 = arith.constant 0 : i32
    %c0_i32_0 = arith.constant 0 : i32
    %c0_i32_1 = arith.constant 0 : i32
    return %c0_i32, %c0_i32_0 : i32, i32
  }
  func.func @transform_4(%arg0: i32) -> (i32, i32) {
    %c0_i32 = arith.constant 0 : i32
    %c0_i32_0 = arith.constant 0 : i32
    %c0_i32_1 = arith.constant 0 : i32
    return %c0_i32, %c0_i32_0 : i32, i32
  }
  func.func @transform_5(%arg0: i32) -> (i32, i32) {
    %c0_i32 = arith.constant 0 : i32
    %c0_i32_0 = arith.constant 0 : i32
    %c0_i32_1 = arith.constant 0 : i32
    return %c0_i32, %c0_i32_0 : i32, i32
  }
  func.func @transform_6(%arg0: i32) -> (i32, i32) {
    %c0_i32 = arith.constant 0 : i32
    %c0_i32_0 = arith.constant 0 : i32
    %c0_i32_1 = arith.constant 0 : i32
    return %c0_i32, %c0_i32_0 : i32, i32
  }
  func.func @transform_7(%arg0: i32) -> (i32, i32, i32) {
    %c0_i32 = arith.constant 0 : i32
    %c0_i32_0 = arith.constant 0 : i32
    %c0_i32_1 = arith.constant 0 : i32
    %c0_i32_2 = arith.constant 0 : i32
    return %c0_i32, %c0_i32_0, %c0_i32_1 : i32, i32, i32
  }
  func.func @transform_8(%arg0: i32) -> (i32, i32) {
    %c0_i32 = arith.constant 0 : i32
    %c0_i32_0 = arith.constant 0 : i32
    %c0_i32_1 = arith.constant 0 : i32
    return %c0_i32, %c0_i32_0 : i32, i32
  }
  func.func @transform_9(%arg0: i32) -> (i32, i32) {
    %c0_i32 = arith.constant 0 : i32
    %c0_i32_0 = arith.constant 0 : i32
    %c0_i32_1 = arith.constant 0 : i32
    return %c0_i32, %c0_i32_0 : i32, i32
  }
  func.func @transform_10(%arg0: i32) -> (i32, i32) {
    %c0_i32 = arith.constant 0 : i32
    %c0_i32_0 = arith.constant 0 : i32
    %c0_i32_1 = arith.constant 0 : i32
    return %c0_i32, %c0_i32_0 : i32, i32
  }
  func.func @transform_11(%arg0: i32) -> (i32, i32) {
    %c0_i32 = arith.constant 0 : i32
    %c0_i32_0 = arith.constant 0 : i32
    %c0_i32_1 = arith.constant 0 : i32
    return %c0_i32, %c0_i32_0 : i32, i32
  }
  func.func @transform_12(%arg0: i32) -> (i32, i32, i32) {
    %c0_i32 = arith.constant 0 : i32
    %c0_i32_0 = arith.constant 0 : i32
    %c0_i32_1 = arith.constant 0 : i32
    %c0_i32_2 = arith.constant 0 : i32
    return %c0_i32, %c0_i32_0, %c0_i32_1 : i32, i32, i32
  }
  func.func @transform_13(%arg0: i32) -> (i32, i32) {
    %c0_i32 = arith.constant 0 : i32
    %c0_i32_0 = arith.constant 0 : i32
    %c0_i32_1 = arith.constant 0 : i32
    return %c0_i32, %c0_i32_0 : i32, i32
  }
  func.func @transform_14(%arg0: i32) -> (i32, i32) {
    %c0_i32 = arith.constant 0 : i32
    %c0_i32_0 = arith.constant 0 : i32
    %c0_i32_1 = arith.constant 0 : i32
    return %c0_i32, %c0_i32_0 : i32, i32
  }
  func.func @transform_15(%arg0: i32) -> (i32, i32) {
    %c0_i32 = arith.constant 0 : i32
    %c0_i32_0 = arith.constant 0 : i32
    %c0_i32_1 = arith.constant 0 : i32
    return %c0_i32, %c0_i32_0 : i32, i32
  }
  func.func @transform_16(%arg0: i32) -> (i32, i32) {
    %c0_i32 = arith.constant 0 : i32
    %c0_i32_0 = arith.constant 0 : i32
    %c0_i32_1 = arith.constant 0 : i32
    return %c0_i32, %c0_i32_0 : i32, i32
  }
  func.func @transform_17(%arg0: i32) -> (i32, i32, i32) {
    %c0_i32 = arith.constant 0 : i32
    %c0_i32_0 = arith.constant 0 : i32
    %c0_i32_1 = arith.constant 0 : i32
    %c0_i32_2 = arith.constant 0 : i32
    return %c0_i32, %c0_i32_0, %c0_i32_1 : i32, i32, i32
  }
  func.func @transform_18(%arg0: i32) -> (i32, i32) {
    %c0_i32 = arith.constant 0 : i32
    %c0_i32_0 = arith.constant 0 : i32
    %c0_i32_1 = arith.constant 0 : i32
    return %c0_i32, %c0_i32_0 : i32, i32
  }
  func.func @transform_19(%arg0: i32) -> (i32, i32) {
    %c0_i32 = arith.constant 0 : i32
    %c0_i32_0 = arith.constant 0 : i32
    %c0_i32_1 = arith.constant 0 : i32
    return %c0_i32, %c0_i32_0 : i32, i32
  }
  func.func @transform_20(%arg0: i32) -> (i32, i32) {
    %c0_i32 = arith.constant 0 : i32
    %c0_i32_0 = arith.constant 0 : i32
    %c0_i32_1 = arith.constant 0 : i32
    return %c0_i32, %c0_i32_0 : i32, i32
  }
  func.func @transform_21(%arg0: i32) -> (i32, i32) {
    %c0_i32 = arith.constant 0 : i32
    %c0_i32_0 = arith.constant 0 : i32
    %c0_i32_1 = arith.constant 0 : i32
    return %c0_i32, %c0_i32_0 : i32, i32
  }
  func.func @transform_22(%arg0: i32) -> (i32, i32) {
    %c0_i32 = arith.constant 0 : i32
    %c0_i32_0 = arith.constant 0 : i32
    return %arg0, %c0_i32 : i32, i32
  }
}

</mosaic_0001>

<llo_original>
// kernel: tpu_custom_call.1
$region0: #{tpu_custom_call.1}
  #allocation0 [shape = 'u32[]', space=smem, size = 0x4, offset = 0x4, fixed_abs, tag = 'smem constant byte address 0x4 - core index']
  #allocation1 [shape = 'u32[72,128]{1,0:T(1,128)}', space=vmem, size = 0x9000, scoped, tag = 'internal scratch']
  %s0 = inlined_call_operand.hbm [shape: f32[16,128], index: 0, kind: input, shape index: {}]
  %s1 = inlined_call_operand.hbm [shape: f32[128,128], index: 1, kind: input, shape index: {}]
  %s2 = inlined_call_operand.hbm [shape: f32[1,128,128], index: 2, kind: input, shape index: {}]
  %s3 = inlined_call_operand.vmem [shape: f32[2,128], index: 3, kind: input, shape index: {}]
  %s4 = inlined_call_operand.hbm [shape: f32[128,128], index: 4, kind: input, shape index: {}]
  %s5 = inlined_call_operand.hbm [shape: f32[128,256], index: 5, kind: input, shape index: {}]
  %s6 = inlined_call_operand.hbm [shape: f32[128,128], index: 6, kind: input, shape index: {}]
  %s7 = inlined_call_operand.hbm [shape: f32[1,128,128], index: 7, kind: input, shape index: {}]
  %s8 = inlined_call_operand.vmem [shape: f32[2,128], index: 8, kind: input, shape index: {}]
  %s9 = inlined_call_operand.hbm [shape: f32[128,128], index: 9, kind: input, shape index: {}]
  %s10 = inlined_call_operand.hbm [shape: f32[128,256], index: 10, kind: input, shape index: {}]
  %s11 = inlined_call_operand.hbm [shape: f32[128,128], index: 11, kind: input, shape index: {}]
  %s12 = inlined_call_operand.hbm [shape: f32[1,128,128], index: 12, kind: input, shape index: {}]
  %s13 = inlined_call_operand.vmem [shape: f32[2,128], index: 13, kind: input, shape index: {}]
  %s14 = inlined_call_operand.hbm [shape: f32[128,128], index: 14, kind: input, shape index: {}]
  %s15 = inlined_call_operand.hbm [shape: f32[128,256], index: 15, kind: input, shape index: {}]
  %s16 = inlined_call_operand.hbm [shape: f32[128,128], index: 16, kind: input, shape index: {}]
  %s17 = inlined_call_operand.hbm [shape: f32[1,128,128], index: 17, kind: input, shape index: {}]
  %s18 = inlined_call_operand.vmem [shape: f32[2,128], index: 18, kind: input, shape index: {}]
  %s19 = inlined_call_operand.hbm [shape: f32[128,128], index: 19, kind: input, shape index: {}]
  %s20 = inlined_call_operand.hbm [shape: f32[128,256], index: 20, kind: input, shape index: {}]
  %s21 = inlined_call_operand.vmem [shape: f32[1,256], index: 21, kind: input, shape index: {}]
  %s22 = inlined_call_operand.hbm [shape: f32[16,128], index: 22, kind: output, shape index: {}]
  %s23 = sld [smem:[#allocation0]]
  $region166: #{tpu_custom_call.1} parent=0
    _
  %s25 = ssub.s32 1, %s23
  %s26 = scalar_select 0, %s25, %s23
  $region1: #{tpu_custom_call.1} parent=0
    #allocation2 [shape = 'u8[8192]{0}', space=vmem, size = 0x2000, scoped, tag = 'input window, operand 0, single buffered']
    #allocation3 [shape = 's32[1]{0}', space=sflag, size = 0x4, scoped, tag = 'scoped memory for tpu_custom_call.1']
    #allocation4 [shape = 's32[1]{0}', space=sflag, size = 0x4, scoped, tag = 'scoped memory for tpu_custom_call.1']
    #allocation5 [shape = 'u8[65536]{0}', space=vmem, size = 0x10000, scoped, tag = 'input window, operand 1, single buffered']
    #allocation6 [shape = 's32[1]{0}', space=sflag, size = 0x4, scoped, tag = 'scoped memory for tpu_custom_call.1']
    #allocation7 [shape = 'u8[65536]{0}', space=vmem, size = 0x10000, scoped, tag = 'input window, operand 2, single buffered']
    #allocation8 [shape = 'u8[65536]{0}', space=vmem, size = 0x10000, scoped, tag = 'input window, operand 4, single buffered']
    #allocation9 [shape = 's32[1]{0}', space=sflag, size = 0x4, scoped, tag = 'scoped memory for tpu_custom_call.1']
    #allocation10 [shape = 'u8[131072]{0}', space=vmem, size = 0x20000, scoped, tag = 'input window, operand 5, single buffered']
    #allocation11 [shape = 'u8[65536]{0}', space=vmem, size = 0x10000, scoped, tag = 'input window, operand 6, single buffered']
    #allocation12 [shape = 's32[1]{0}', space=sflag, size = 0x4, scoped, tag = 'scoped memory for tpu_custom_call.1']
    #allocation13 [shape = 'u8[65536]{0}', space=vmem, size = 0x10000, scoped, tag = 'input window, operand 7, single buffered']
    #allocation14 [shape = 'u8[65536]{0}', space=vmem, size = 0x10000, scoped, tag = 'input window, operand 9, single buffered']
    #allocation15 [shape = 's32[1]{0}', space=sflag, size = 0x4, scoped, tag = 'scoped memory for tpu_custom_call.1']
    #allocation16 [shape = 'u8[131072]{0}', space=vmem, size = 0x20000, scoped, tag = 'input window, operand 10, single buffered']
    #allocation17 [shape = 'u8[65536]{0}', space=vmem, size = 0x10000, scoped, tag = 'input window, operand 11, single buffered']
    #allocation18 [shape = 's32[1]{0}', space=sflag, size = 0x4, scoped, tag = 'scoped memory for tpu_custom_call.1']
    #allocation19 [shape = 'u8[65536]{0}', space=vmem, size = 0x10000, scoped, tag = 'input window, operand 12, single buffered']
    #allocation20 [shape = 'u8[65536]{0}', space=vmem, size = 0x10000, scoped, tag = 'input window, operand 14, single buffered']
    #allocation21 [shape = 's32[1]{0}', space=sflag, size = 0x4, scoped, tag = 'scoped memory for tpu_custom_call.1']
    #allocation22 [shape = 'u8[131072]{0}', space=vmem, size = 0x20000, scoped, tag = 'input window, operand 15, single buffered']
    #allocation23 [shape = 'u8[65536]{0}', space=vmem, size = 0x10000, scoped, tag = 'input window, operand 16, single buffered']
    #allocation24 [shape = 's32[1]{0}', space=sflag, size = 0x4, scoped, tag = 'scoped memory for tpu_custom_call.1']
    #allocation25 [shape = 'u8[65536]{0}', space=vmem, size = 0x10000, scoped, tag = 'input window, operand 17, single buffered']
    #allocation26 [shape = 'u8[65536]{0}', space=vmem, size = 0x10000, scoped, tag = 'input window, operand 19, single buffered']
    #allocation27 [shape = 's32[1]{0}', space=sflag, size = 0x4, scoped, tag = 'scoped memory for tpu_custom_call.1']
    #allocation28 [shape = 'u8[131072]{0}', space=vmem, size = 0x20000, scoped, tag = 'input window, operand 20, single buffered']
    #allocation29 [shape = 'u8[8192]{0}', space=vmem, size = 0x2000, scoped, tag = 'output window, operand 0, single buffered']
    %27 = vsyncpa [#allocation3], 0
    %28 = vsyncpa [#allocation6], 0
    %29 = vsyncpa [#allocation9], 0
    %30 = vsyncpa [#allocation12], 0
    %31 = vsyncpa [#allocation15], 0
    %32 = vsyncpa [#allocation18], 0
    %33 = vsyncpa [#allocation21], 0
    %34 = vsyncpa [#allocation24], 0
    %35 = vsyncpa [#allocation27], 0
    %36 = vsyncpa [#allocation4], 0
    // Predicated region
    $region2: #{tpu_custom_call.1} parent=1 // pred_check
      _
    $region3: #{tpu_custom_call.1} parent=1 // pred_check_branch
      %38 = sbr.rel (0) target = $region5
    $region4: #{tpu_custom_call.1} parent=1 // pred_region
      %40 = vsyncadd [#allocation3], 0
      %s41 = sshll.u32 %s0, 4
      %s42 = int_to_ptr.hbm [resolvable:$true] %s41
      %s43 = sshll.u32 [#allocation2], 4
      %s44 = int_to_ptr.vmem [resolvable:$true] %s43
      %49 = dma.hbm_to_vmem [thread:$0]  %s42, 256, %s44, [#allocation3], 128, 128, 8
    $region5: #{tpu_custom_call.1} parent=1 // pred_fallthru
      _
    // Predicated region
    $region6: #{tpu_custom_call.1} parent=1 // pred_check
      _
    $region7: #{tpu_custom_call.1} parent=1 // pred_check_branch
      %51 = sbr.rel (0) target = $region9
    $region8: #{tpu_custom_call.1} parent=1 // pred_region
      %53 = vsyncadd [#allocation6], 0
      %s54 = sshll.u32 %s1, 4
      %s55 = int_to_ptr.hbm [resolvable:$true] %s54
      %s56 = sshll.u32 [#allocation5], 4
      %s57 = int_to_ptr.vmem [resolvable:$true] %s56
      %62 = dma.hbm_to_vmem [thread:$0]  %s55, 2048, %s57, [#allocation6], 128, 128, 8
    $region9: #{tpu_custom_call.1} parent=1 // pred_fallthru
      _
    // Predicated region
    $region10: #{tpu_custom_call.1} parent=1 // pred_check
      _
    $region11: #{tpu_custom_call.1} parent=1 // pred_check_branch
      %64 = sbr.rel (0) target = $region13
    $region12: #{tpu_custom_call.1} parent=1 // pred_region
      %66 = vsyncadd [#allocation6], 0
      %s67 = sshll.u32 %s2, 4
      %s68 = int_to_ptr.hbm [resolvable:$true] %s67
      %s69 = sshll.u32 [#allocation7], 4
      %s70 = int_to_ptr.vmem [resolvable:$true] %s69
      %75 = dma.hbm_to_vmem [thread:$0]  %s68, 2048, %s70, [#allocation6], 128, 128, 8
    $region13: #{tpu_custom_call.1} parent=1 // pred_fallthru
      _
    // Predicated region
    $region14: #{tpu_custom_call.1} parent=1 // pred_check
      _
    $region15: #{tpu_custom_call.1} parent=1 // pred_check_branch
      %77 = sbr.rel (0) target = $region17
    $region16: #{tpu_custom_call.1} parent=1 // pred_region
      _
    $region17: #{tpu_custom_call.1} parent=1 // pred_fallthru
      _
    // Predicated region
    $region18: #{tpu_custom_call.1} parent=1 // pred_check
      _
    $region19: #{tpu_custom_call.1} parent=1 // pred_check_branch
      %79 = sbr.rel (0) target = $region21
    $region20: #{tpu_custom_call.1} parent=1 // pred_region
      %81 = vsyncadd [#allocation9], 0
      %s82 = sshll.u32 %s4, 4
      %s83 = int_to_ptr.hbm [resolvable:$true] %s82
      %s84 = sshll.u32 [#allocation8], 4
      %s85 = int_to_ptr.vmem [resolvable:$true] %s84
      %90 = dma.hbm_to_vmem [thread:$0]  %s83, 2048, %s85, [#allocation9], 128, 128, 8
    $region21: #{tpu_custom_call.1} parent=1 // pred_fallthru
      _
    // Predicated region
    $region22: #{tpu_custom_call.1} parent=1 // pred_check
      _
    $region23: #{tpu_custom_call.1} parent=1 // pred_check_branch
      %92 = sbr.rel (0) target = $region25
    $region24: #{tpu_custom_call.1} parent=1 // pred_region
      %94 = vsyncadd [#allocation9], 0
      %s95 = sshll.u32 %s5, 4
      %s96 = int_to_ptr.hbm [resolvable:$true] %s95
      %s97 = sshll.u32 [#allocation10], 4
      %s98 = int_to_ptr.vmem [resolvable:$true] %s97
      %103 = dma.hbm_to_vmem [thread:$0]  %s96, 4096, %s98, [#allocation9], 256, 256, 16
    $region25: #{tpu_custom_call.1} parent=1 // pred_fallthru
      _
    // Predicated region
    $region26: #{tpu_custom_call.1} parent=1 // pred_check
      _
    $region27: #{tpu_custom_call.1} parent=1 // pred_check_branch
      %105 = sbr.rel (0) target = $region29
    $region28: #{tpu_custom_call.1} parent=1 // pred_region
      %107 = vsyncadd [#allocation12], 0
      %s108 = sshll.u32 %s6, 4
      %s109 = int_to_ptr.hbm [resolvable:$true] %s108
      %s110 = sshll.u32 [#allocation11], 4
      %s111 = int_to_ptr.vmem [resolvable:$true] %s110
      %116 = dma.hbm_to_vmem [thread:$0]  %s109, 2048, %s111, [#allocation12], 128, 128, 8
    $region29: #{tpu_custom_call.1} parent=1 // pred_fallthru
      _
    // Predicated region
    $region30: #{tpu_custom_call.1} parent=1 // pred_check
      _
    $region31: #{tpu_custom_call.1} parent=1 // pred_check_branch
      %118 = sbr.rel (0) target = $region33
    $region32: #{tpu_custom_call.1} parent=1 // pred_region
      %120 = vsyncadd [#allocation12], 0
      %s121 = sshll.u32 %s7, 4
      %s122 = int_to_ptr.hbm [resolvable:$true] %s121
      %s123 = sshll.u32 [#allocation13], 4
      %s124 = int_to_ptr.vmem [resolvable:$true] %s123
      %129 = dma.hbm_to_vmem [thread:$0]  %s122, 2048, %s124, [#allocation12], 128, 128, 8
    $region33: #{tpu_custom_call.1} parent=1 // pred_fallthru
      _
    // Predicated region
    $region34: #{tpu_custom_call.1} parent=1 // pred_check
      _
    $region35: #{tpu_custom_call.1} parent=1 // pred_check_branch
      %131 = sbr.rel (0) target = $region37
    $region36: #{tpu_custom_call.1} parent=1 // pred_region
      _
    $region37: #{tpu_custom_call.1} parent=1 // pred_fallthru
      _
    // Predicated region
    $region38: #{tpu_custom_call.1} parent=1 // pred_check
      _
    $region39: #{tpu_custom_call.1} parent=1 // pred_check_branch
      %133 = sbr.rel (0) target = $region41
    $region40: #{tpu_custom_call.1} parent=1 // pred_region
      %135 = vsyncadd [#allocation15], 0
      %s136 = sshll.u32 %s9, 4
      %s137 = int_to_ptr.hbm [resolvable:$true] %s136
      %s138 = sshll.u32 [#allocation14], 4
      %s139 = int_to_ptr.vmem [resolvable:$true] %s138
      %144 = dma.hbm_to_vmem [thread:$0]  %s137, 2048, %s139, [#allocation15], 128, 128, 8
    $region41: #{tpu_custom_call.1} parent=1 // pred_fallthru
      _
    // Predicated region
    $region42: #{tpu_custom_call.1} parent=1 // pred_check
      _
    $region43: #{tpu_custom_call.1} parent=1 // pred_check_branch
      %146 = sbr.rel (0) target = $region45
    $region44: #{tpu_custom_call.1} parent=1 // pred_region
      %148 = vsyncadd [#allocation15], 0
      %s149 = sshll.u32 %s10, 4
      %s150 = int_to_ptr.hbm [resolvable:$true] %s149
      %s151 = sshll.u32 [#allocation16], 4
      %s152 = int_to_ptr.vmem [resolvable:$true] %s151
      %157 = dma.hbm_to_vmem [thread:$0]  %s150, 4096, %s152, [#allocation15], 256, 256, 16
    $region45: #{tpu_custom_call.1} parent=1 // pred_fallthru
      _
    // Predicated region
    $region46: #{tpu_custom_call.1} parent=1 // pred_check
      _
    $region47: #{tpu_custom_call.1} parent=1 // pred_check_branch
      %159 = sbr.rel (0) target = $region49
    $region48: #{tpu_custom_call.1} parent=1 // pred_region
      %161 = vsyncadd [#allocation18], 0
      %s162 = sshll.u32 %s11, 4
      %s163 = int_to_ptr.hbm [resolvable:$true] %s162
      %s164 = sshll.u32 [#allocation17], 4
      %s165 = int_to_ptr.vmem [resolvable:$true] %s164
      %170 = dma.hbm_to_vmem [thread:$0]  %s163, 2048, %s165, [#allocation18], 128, 128, 8
    $region49: #{tpu_custom_call.1} parent=1 // pred_fallthru
      _
    // Predicated region
    $region50: #{tpu_custom_call.1} parent=1 // pred_check
      _
    $region51: #{tpu_custom_call.1} parent=1 // pred_check_branch
      %172 = sbr.rel (0) target = $region53
    $region52: #{tpu_custom_call.1} parent=1 // pred_region
      %174 = vsyncadd [#allocation18], 0
      %s175 = sshll.u32 %s12, 4
      %s176 = int_to_ptr.hbm [resolvable:$true] %s175
      %s177 = sshll.u32 [#allocation19], 4
      %s178 = int_to_ptr.vmem [resolvable:$true] %s177
      %183 = dma.hbm_to_vmem [thread:$0]  %s176, 2048, %s178, [#allocation18], 128, 128, 8
    $region53: #{tpu_custom_call.1} parent=1 // pred_fallthru
      _
    // Predicated region
    $region54: #{tpu_custom_call.1} parent=1 // pred_check
      _
    $region55: #{tpu_custom_call.1} parent=1 // pred_check_branch
      %185 = sbr.rel (0) target = $region57
    $region56: #{tpu_custom_call.1} parent=1 // pred_region
      _
    $region57: #{tpu_custom_call.1} parent=1 // pred_fallthru
      _
    // Predicated region
    $region58: #{tpu_custom_call.1} parent=1 // pred_check
      _
    $region59: #{tpu_custom_call.1} parent=1 // pred_check_branch
      %187 = sbr.rel (0) target = $region61
    $region60: #{tpu_custom_call.1} parent=1 // pred_region
      %189 = vsyncadd [#allocation21], 0
      %s190 = sshll.u32 %s14, 4
      %s191 = int_to_ptr.hbm [resolvable:$true] %s190
      %s192 = sshll.u32 [#allocation20], 4
      %s193 = int_to_ptr.vmem [resolvable:$true] %s192
      %198 = dma.hbm_to_vmem [thread:$0]  %s191, 2048, %s193, [#allocation21], 128, 128, 8
    $region61: #{tpu_custom_call.1} parent=1 // pred_fallthru
      _
    // Predicated region
    $region62: #{tpu_custom_call.1} parent=1 // pred_check
      _
    $region63: #{tpu_custom_call.1} parent=1 // pred_check_branch
      %200 = sbr.rel (0) target = $region65
    $region64: #{tpu_custom_call.1} parent=1 // pred_region
      %202 = vsyncadd [#allocation21], 0
      %s203 = sshll.u32 %s15, 4
      %s204 = int_to_ptr.hbm [resolvable:$true] %s203
      %s205 = sshll.u32 [#allocation22], 4
      %s206 = int_to_ptr.vmem [resolvable:$true] %s205
      %211 = dma.hbm_to_vmem [thread:$0]  %s204, 4096, %s206, [#allocation21], 256, 256, 16
    $region65: #{tpu_custom_call.1} parent=1 // pred_fallthru
      _
    // Predicated region
    $region66: #{tpu_custom_call.1} parent=1 // pred_check
      _
    $region67: #{tpu_custom_call.1} parent=1 // pred_check_branch
      %213 = sbr.rel (0) target = $region69
    $region68: #{tpu_custom_call.1} parent=1 // pred_region
      %215 = vsyncadd [#allocation24], 0
      %s216 = sshll.u32 %s16, 4
      %s217 = int_to_ptr.hbm [resolvable:$true] %s216
      %s218 = sshll.u32 [#allocation23], 4
      %s219 = int_to_ptr.vmem [resolvable:$true] %s218
      %224 = dma.hbm_to_vmem [thread:$0]  %s217, 2048, %s219, [#allocation24], 128, 128, 8
    $region69: #{tpu_custom_call.1} parent=1 // pred_fallthru
      _
    // Predicated region
    $region70: #{tpu_custom_call.1} parent=1 // pred_check
      _
    $region71: #{tpu_custom_call.1} parent=1 // pred_check_branch
      %226 = sbr.rel (0) target = $region73
    $region72: #{tpu_custom_call.1} parent=1 // pred_region
      %228 = vsyncadd [#allocation24], 0
      %s229 = sshll.u32 %s17, 4
      %s230 = int_to_ptr.hbm [resolvable:$true] %s229
      %s231 = sshll.u32 [#allocation25], 4
      %s232 = int_to_ptr.vmem [resolvable:$true] %s231
      %237 = dma.hbm_to_vmem [thread:$0]  %s230, 2048, %s232, [#allocation24], 128, 128, 8
    $region73: #{tpu_custom_call.1} parent=1 // pred_fallthru
      _
    // Predicated region
    $region74: #{tpu_custom_call.1} parent=1 // pred_check
      _
    $region75: #{tpu_custom_call.1} parent=1 // pred_check_branch
      %239 = sbr.rel (0) target = $region77
    $region76: #{tpu_custom_call.1} parent=1 // pred_region
      _
    $region77: #{tpu_custom_call.1} parent=1 // pred_fallthru
      _
    // Predicated region
    $region78: #{tpu_custom_call.1} parent=1 // pred_check
      _
    $region79: #{tpu_custom_call.1} parent=1 // pred_check_branch
      %241 = sbr.rel (0) target = $region81
    $region80: #{tpu_custom_call.1} parent=1 // pred_region
      %243 = vsyncadd [#allocation27], 0
      %s244 = sshll.u32 %s19, 4
      %s245 = int_to_ptr.hbm [resolvable:$true] %s244
      %s246 = sshll.u32 [#allocation26], 4
      %s247 = int_to_ptr.vmem [resolvable:$true] %s246
      %252 = dma.hbm_to_vmem [thread:$0]  %s245, 2048, %s247, [#allocation27], 128, 128, 8
    $region81: #{tpu_custom_call.1} parent=1 // pred_fallthru
      _
    // Predicated region
    $region82: #{tpu_custom_call.1} parent=1 // pred_check
      _
    $region83: #{tpu_custom_call.1} parent=1 // pred_check_branch
      %254 = sbr.rel (0) target = $region85
    $region84: #{tpu_custom_call.1} parent=1 // pred_region
      %256 = vsyncadd [#allocation27], 0
      %s257 = sshll.u32 %s20, 4
      %s258 = int_to_ptr.hbm [resolvable:$true] %s257
      %s259 = sshll.u32 [#allocation28], 4
      %s260 = int_to_ptr.vmem [resolvable:$true] %s259
      %265 = dma.hbm_to_vmem [thread:$0]  %s258, 4096, %s260, [#allocation27], 256, 256, 16
    $region85: #{tpu_custom_call.1} parent=1 // pred_fallthru
      _
    // Predicated region
    $region86: #{tpu_custom_call.1} parent=1 // pred_check
      _
    $region87: #{tpu_custom_call.1} parent=1 // pred_check_branch
      %267 = sbr.rel (0) target = $region89
    $region88: #{tpu_custom_call.1} parent=1 // pred_region
      _
    $region89: #{tpu_custom_call.1} parent=1 // pred_fallthru
      _
    // Predicated region
    $region90: #{tpu_custom_call.1} parent=1 // pred_check
      _
    $region91: #{tpu_custom_call.1} parent=1 // pred_check_branch
      %269 = sbr.rel (0) target = $region93
    $region92: #{tpu_custom_call.1} parent=1 // pred_region
      %271 = dma.done [#allocation3], 256
    $region93: #{tpu_custom_call.1} parent=1 // pred_fallthru
      _
    // Predicated region
    $region94: #{tpu_custom_call.1} parent=1 // pred_check
      _
    $region95: #{tpu_custom_call.1} parent=1 // pred_check_branch
      %273 = sbr.rel (0) target = $region97
    $region96: #{tpu_custom_call.1} parent=1 // pred_region
      %275 = dma.done [#allocation6], 2048
    $region97: #{tpu_custom_call.1} parent=1 // pred_fallthru
      _
    // Predicated region
    $region98: #{tpu_custom_call.1} parent=1 // pred_check
      _
    $region99: #{tpu_custom_call.1} parent=1 // pred_check_branch
      %277 = sbr.rel (0) target = $region101
    $region100: #{tpu_custom_call.1} parent=1 // pred_region
      %279 = dma.done [#allocation6], 2048
    $region101: #{tpu_custom_call.1} parent=1 // pred_fallthru
      _
    // Predicated region
    $region102: #{tpu_custom_call.1} parent=1 // pred_check
      _
    $region103: #{tpu_custom_call.1} parent=1 // pred_check_branch
      %281 = sbr.rel (0) target = $region105
    $region104: #{tpu_custom_call.1} parent=1 // pred_region
      %283 = dma.done [#allocation9], 2048
    $region105: #{tpu_custom_call.1} parent=1 // pred_fallthru
      _
    // Predicated region
    $region106: #{tpu_custom_call.1} parent=1 // pred_check
      _
    $region107: #{tpu_custom_call.1} parent=1 // pred_check_branch
      %285 = sbr.rel (0) target = $region109
    $region108: #{tpu_custom_call.1} parent=1 // pred_region
      %287 = dma.done [#allocation9], 4096
    $region109: #{tpu_custom_call.1} parent=1 // pred_fallthru
      _
    // Predicated region
    $region110: #{tpu_custom_call.1} parent=1 // pred_check
      _
    $region111: #{tpu_custom_call.1} parent=1 // pred_check_branch
      %289 = sbr.rel (0) target = $region113
    $region112: #{tpu_custom_call.1} parent=1 // pred_region
      %291 = dma.done [#allocation12], 2048
    $region113: #{tpu_custom_call.1} parent=1 // pred_fallthru
      _
    // Predicated region
    $region114: #{tpu_custom_call.1} parent=1 // pred_check
      _
    $region115: #{tpu_custom_call.1} parent=1 // pred_check_branch
      %293 = sbr.rel (0) target = $region117
    $region116: #{tpu_custom_call.1} parent=1 // pred_region
      %295 = dma.done [#allocation12], 2048
    $region117: #{tpu_custom_call.1} parent=1 // pred_fallthru
      _
    // Predicated region
    $region118: #{tpu_custom_call.1} parent=1 // pred_check
      _
    $region119: #{tpu_custom_call.1} parent=1 // pred_check_branch
      %297 = sbr.rel (0) target = $region121
    $region120: #{tpu_custom_call.1} parent=1 // pred_region
      %299 = dma.done [#allocation15], 2048
    $region121: #{tpu_custom_call.1} parent=1 // pred_fallthru
      _
    // Predicated region
    $region122: #{tpu_custom_call.1} parent=1 // pred_check
      _
    $region123: #{tpu_custom_call.1} parent=1 // pred_check_branch
      %301 = sbr.rel (0) target = $region125
    $region124: #{tpu_custom_call.1} parent=1 // pred_region
      %303 = dma.done [#allocation15], 4096
    $region125: #{tpu_custom_call.1} parent=1 // pred_fallthru
      _
    // Predicated region
    $region126: #{tpu_custom_call.1} parent=1 // pred_check
      _
    $region127: #{tpu_custom_call.1} parent=1 // pred_check_branch
      %305 = sbr.rel (0) target = $region129
    $region128: #{tpu_custom_call.1} parent=1 // pred_region
      %307 = dma.done [#allocation18], 2048
    $region129: #{tpu_custom_call.1} parent=1 // pred_fallthru
      _
    // Predicated region
    $region130: #{tpu_custom_call.1} parent=1 // pred_check
      _
    $region131: #{tpu_custom_call.1} parent=1 // pred_check_branch
      %309 = sbr.rel (0) target = $region133
    $region132: #{tpu_custom_call.1} parent=1 // pred_region
      %311 = dma.done [#allocation18], 2048
    $region133: #{tpu_custom_call.1} parent=1 // pred_fallthru
      _
    // Predicated region
    $region134: #{tpu_custom_call.1} parent=1 // pred_check
      _
    $region135: #{tpu_custom_call.1} parent=1 // pred_check_branch
      %313 = sbr.rel (0) target = $region137
    $region136: #{tpu_custom_call.1} parent=1 // pred_region
      %315 = dma.done [#allocation21], 2048
    $region137: #{tpu_custom_call.1} parent=1 // pred_fallthru
      _
    // Predicated region
    $region138: #{tpu_custom_call.1} parent=1 // pred_check
      _
    $region139: #{tpu_custom_call.1} parent=1 // pred_check_branch
      %317 = sbr.rel (0) target = $region141
    $region140: #{tpu_custom_call.1} parent=1 // pred_region
      %319 = dma.done [#allocation21], 4096
    $region141: #{tpu_custom_call.1} parent=1 // pred_fallthru
      _
    // Predicated region
    $region142: #{tpu_custom_call.1} parent=1 // pred_check
      _
    $region143: #{tpu_custom_call.1} parent=1 // pred_check_branch
      %321 = sbr.rel (0) target = $region145
    $region144: #{tpu_custom_call.1} parent=1 // pred_region
      %323 = dma.done [#allocation24], 2048
    $region145: #{tpu_custom_call.1} parent=1 // pred_fallthru
      _
    // Predicated region
    $region146: #{tpu_custom_call.1} parent=1 // pred_check
      _
    $region147: #{tpu_custom_call.1} parent=1 // pred_check_branch
      %325 = sbr.rel (0) target = $region149
    $region148: #{tpu_custom_call.1} parent=1 // pred_region
      %327 = dma.done [#allocation24], 2048
    $region149: #{tpu_custom_call.1} parent=1 // pred_fallthru
      _
    // Predicated region
    $region150: #{tpu_custom_call.1} parent=1 // pred_check
      _
    $region151: #{tpu_custom_call.1} parent=1 // pred_check_branch
      %329 = sbr.rel (0) target = $region153
    $region152: #{tpu_custom_call.1} parent=1 // pred_region
      %331 = dma.done [#allocation27], 2048
    $region153: #{tpu_custom_call.1} parent=1 // pred_fallthru
      _
    // Predicated region
    $region154: #{tpu_custom_call.1} parent=1 // pred_check
      _
    $region155: #{tpu_custom_call.1} parent=1 // pred_check_branch
      %333 = sbr.rel (0) target = $region157
    $region156: #{tpu_custom_call.1} parent=1 // pred_region
      %335 = dma.done [#allocation27], 4096
    $region157: #{tpu_custom_call.1} parent=1 // pred_fallthru
      _
    %v336 = vld [vmem:[#allocation2] sm:$0xff]
    %v337 = vld [vmem:[#allocation2 + $0x8] sm:$0xff]
    %338 = vst [vmem:[#allocation29] sm:$0xff] 0.0
    %339 = vst [vmem:[#allocation29 + $0x8] sm:$0xff] 0.0
    %v340 = vld [vmem:[#allocation5] sm:$0xff]
    %v341 = vld [vmem:[#allocation5 + $0x8] sm:$0xff]
    %v342 = vld [vmem:[#allocation5 + $0x10] sm:$0xff]
    %v343 = vld [vmem:[#allocation5 + $0x18] sm:$0xff]
    %v344 = vld [vmem:[#allocation5 + $0x20] sm:$0xff]
    %v345 = vld [vmem:[#allocation5 + $0x28] sm:$0xff]
    %v346 = vld [vmem:[#allocation5 + $0x30] sm:$0xff]
    %v347 = vld [vmem:[#allocation5 + $0x38] sm:$0xff]
    %v348 = vld [vmem:[#allocation5 + $0x40] sm:$0xff]
    %v349 = vld [vmem:[#allocation5 + $0x48] sm:$0xff]
    %v350 = vld [vmem:[#allocation5 + $0x50] sm:$0xff]
    %v351 = vld [vmem:[#allocation5 + $0x58] sm:$0xff]
    %v352 = vld [vmem:[#allocation5 + $0x60] sm:$0xff]
    %v353 = vld [vmem:[#allocation5 + $0x68] sm:$0xff]
    %v354 = vld [vmem:[#allocation5 + $0x70] sm:$0xff]
    %v355 = vld [vmem:[#allocation5 + $0x78] sm:$0xff]
    %v356 = vld [vmem:[%s3] sm:$0x1]
    %v357 = vperm.slane %v356, 0
    %358 = vmatpush.msra.mxu0 %v355
    %359 = vmatpush.msra.mxu0 %v354
    %360 = vmatpush.msra.mxu0 %v353
    %361 = vmatpush.msra.mxu0 %v352
    %362 = vmatpush.msra.mxu0 %v351
    %363 = vmatpush.msra.mxu0 %v350
    %364 = vmatpush.msra.mxu0 %v349
    %365 = vmatpush.msra.mxu0 %v348
    %366 = vmatpush.msra.mxu0 %v347
    %367 = vmatpush.msra.mxu0 %v346
    %368 = vmatpush.msra.mxu0 %v345
    %369 = vmatpush.msra.mxu0 %v344
    %370 = vmatpush.msra.mxu0 %v343
    %371 = vmatpush.msra.mxu0 %v342
    %372 = vmatpush.msra.mxu0 %v341
    %373 = vmatpush.msra.mxu0 %v340
    %374 = vmatmul.f32.gmra.mxu0 %v336
    %v375 = vpop.f32.mrf.mxu0
    %v376 = vadd.f32 %v357, %v375
    %377 = vmatmul.f32.gmra.mxu0 %v337
    %v378 = vpop.f32.mrf.mxu0
    %v379 = vadd.f32 %v357, %v378
    %380 = vdwg.mxu0
    %v381 = vmax.f32 %v376, 0.0
    %v382 = vmax.f32 %v379, 0.0
    %v383 = vld [vmem:[#allocation7] sm:$0xff]
    %v384 = vld [vmem:[#allocation7 + $0x8] sm:$0xff]
    %v385 = vld [vmem:[#allocation7 + $0x10] sm:$0xff]
    %v386 = vld [vmem:[#allocation7 + $0x18] sm:$0xff]
    %v387 = vld [vmem:[#allocation7 + $0x20] sm:$0xff]
    %v388 = vld [vmem:[#allocation7 + $0x28] sm:$0xff]
    %v389 = vld [vmem:[#allocation7 + $0x30] sm:$0xff]
    %v390 = vld [vmem:[#allocation7 + $0x38] sm:$0xff]
    %v391 = vld [vmem:[#allocation7 + $0x40] sm:$0xff]
    %v392 = vld [vmem:[#allocation7 + $0x48] sm:$0xff]
    %v393 = vld [vmem:[#allocation7 + $0x50] sm:$0xff]
    %v394 = vld [vmem:[#allocation7 + $0x58] sm:$0xff]
    %v395 = vld [vmem:[#allocation7 + $0x60] sm:$0xff]
    %v396 = vld [vmem:[#allocation7 + $0x68] sm:$0xff]
    %v397 = vld [vmem:[#allocation7 + $0x70] sm:$0xff]
    %v398 = vld [vmem:[#allocation7 + $0x78] sm:$0xff]
    %v399 = vld [vmem:[%s3 + $0x1] sm:$0x1]
    %v400 = vperm.slane %v399, 0
    %401 = vmatpush.msra.mxu0 %v398
    %402 = vmatpush.msra.mxu0 %v397
    %403 = vmatpush.msra.mxu0 %v396
    %404 = vmatpush.msra.mxu0 %v395
    %405 = vmatpush.msra.mxu0 %v394
    %406 = vmatpush.msra.mxu0 %v393
    %407 = vmatpush.msra.mxu0 %v392
    %408 = vmatpush.msra.mxu0 %v391
    %409 = vmatpush.msra.mxu0 %v390
    %410 = vmatpush.msra.mxu0 %v389
    %411 = vmatpush.msra.mxu0 %v388
    %412 = vmatpush.msra.mxu0 %v387
    %413 = vmatpush.msra.mxu0 %v386
    %414 = vmatpush.msra.mxu0 %v385
    %415 = vmatpush.msra.mxu0 %v384
    %416 = vmatpush.msra.mxu0 %v383
    %417 = vmatmul.f32.gmra.mxu0 %v381
    %v418 = vpop.f32.mrf.mxu0
    %v419 = vadd.f32 %v400, %v418
    %420 = vmatmul.f32.gmra.mxu0 %v382
    %v421 = vpop.f32.mrf.mxu0
    %v422 = vadd.f32 %v400, %v421
    %423 = vdwg.mxu0
    %v424 = vmax.f32 %v419, 0.0
    %v425 = vmax.f32 %v422, 0.0
    %v426 = vld [vmem:[#allocation8] sm:$0xff]
    %v427 = vld [vmem:[#allocation8 + $0x8] sm:$0xff]
    %v428 = vld [vmem:[#allocation8 + $0x10] sm:$0xff]
    %v429 = vld [vmem:[#allocation8 + $0x18] sm:$0xff]
    %v430 = vld [vmem:[#allocation8 + $0x20] sm:$0xff]
    %v431 = vld [vmem:[#allocation8 + $0x28] sm:$0xff]
    %v432 = vld [vmem:[#allocation8 + $0x30] sm:$0xff]
    %v433 = vld [vmem:[#allocation8 + $0x38] sm:$0xff]
    %v434 = vld [vmem:[#allocation8 + $0x40] sm:$0xff]
    %v435 = vld [vmem:[#allocation8 + $0x48] sm:$0xff]
    %v436 = vld [vmem:[#allocation8 + $0x50] sm:$0xff]
    %v437 = vld [vmem:[#allocation8 + $0x58] sm:$0xff]
    %v438 = vld [vmem:[#allocation8 + $0x60] sm:$0xff]
    %v439 = vld [vmem:[#allocation8 + $0x68] sm:$0xff]
    %v440 = vld [vmem:[#allocation8 + $0x70] sm:$0xff]
    %v441 = vld [vmem:[#allocation8 + $0x78] sm:$0xff]
    %442 = vmatpush.msra.mxu0 %v441
    %443 = vmatpush.msra.mxu0 %v440
    %444 = vmatpush.msra.mxu0 %v439
    %445 = vmatpush.msra.mxu0 %v438
    %446 = vmatpush.msra.mxu0 %v437
    %447 = vmatpush.msra.mxu0 %v436
    %448 = vmatpush.msra.mxu0 %v435
    %449 = vmatpush.msra.mxu0 %v434
    %450 = vmatpush.msra.mxu0 %v433
    %451 = vmatpush.msra.mxu0 %v432
    %452 = vmatpush.msra.mxu0 %v431
    %453 = vmatpush.msra.mxu0 %v430
    %454 = vmatpush.msra.mxu0 %v429
    %455 = vmatpush.msra.mxu0 %v428
    %456 = vmatpush.msra.mxu0 %v427
    %457 = vmatpush.msra.mxu0 %v426
    %458 = vmatmul.f32.gmra.mxu0 %v424
    %v459 = vpop.f32.mrf.mxu0
    %v460 = vadd.f32 0.0, %v459
    %461 = vmatmul.f32.gmra.mxu0 %v425
    %v462 = vpop.f32.mrf.mxu0
    %v463 = vadd.f32 0.0, %v462
    %464 = vdwg.mxu0
    %v465 = vld [vmem:[#allocation10] sm:$0xff]
    %v466 = vld [vmem:[#allocation10 + $0x8] sm:$0xff]
    %v467 = vld [vmem:[#allocation10 + $0x10] sm:$0xff]
    %v468 = vld [vmem:[#allocation10 + $0x18] sm:$0xff]
    %v469 = vld [vmem:[#allocation10 + $0x20] sm:$0xff]
    %v470 = vld [vmem:[#allocation10 + $0x28] sm:$0xff]
    %v471 = vld [vmem:[#allocation10 + $0x30] sm:$0xff]
    %v472 = vld [vmem:[#allocation10 + $0x38] sm:$0xff]
    %v473 = vld [vmem:[#allocation10 + $0x40] sm:$0xff]
    %v474 = vld [vmem:[#allocation10 + $0x48] sm:$0xff]
    %v475 = vld [vmem:[#allocation10 + $0x50] sm:$0xff]
    %v476 = vld [vmem:[#allocation10 + $0x58] sm:$0xff]
    %v477 = vld [vmem:[#allocation10 + $0x60] sm:$0xff]
    %v478 = vld [vmem:[#allocation10 + $0x68] sm:$0xff]
    %v479 = vld [vmem:[#allocation10 + $0x70] sm:$0xff]
    %v480 = vld [vmem:[#allocation10 + $0x78] sm:$0xff]
    %v481 = vld [vmem:[#allocation10 + $0x80] sm:$0xff]
    %v482 = vld [vmem:[#allocation10 + $0x88] sm:$0xff]
    %v483 = vld [vmem:[#allocation10 + $0x90] sm:$0xff]
    %v484 = vld [vmem:[#allocation10 + $0x98] sm:$0xff]
    %v485 = vld [vmem:[#allocation10 + $0xa0] sm:$0xff]
    %v486 = vld [vmem:[#allocation10 + $0xa8] sm:$0xff]
    %v487 = vld [vmem:[#allocation10 + $0xb0] sm:$0xff]
    %v488 = vld [vmem:[#allocation10 + $0xb8] sm:$0xff]
    %v489 = vld [vmem:[#allocation10 + $0xc0] sm:$0xff]
    %v490 = vld [vmem:[#allocation10 + $0xc8] sm:$0xff]
    %v491 = vld [vmem:[#allocation10 + $0xd0] sm:$0xff]
    %v492 = vld [vmem:[#allocation10 + $0xd8] sm:$0xff]
    %v493 = vld [vmem:[#allocation10 + $0xe0] sm:$0xff]
    %v494 = vld [vmem:[#allocation10 + $0xe8] sm:$0xff]
    %v495 = vld [vmem:[#allocation10 + $0xf0] sm:$0xff]
    %v496 = vld [vmem:[#allocation10 + $0xf8] sm:$0xff]
    %497 = vmatpush.msra.mxu0 %v495
    %498 = vmatpush.msra.mxu0 %v493
    %499 = vmatpush.msra.mxu0 %v491
    %500 = vmatpush.msra.mxu0 %v489
    %501 = vmatpush.msra.mxu0 %v487
    %502 = vmatpush.msra.mxu0 %v485
    %503 = vmatpush.msra.mxu0 %v483
    %504 = vmatpush.msra.mxu0 %v481
    %505 = vmatpush.msra.mxu0 %v479
    %506 = vmatpush.msra.mxu0 %v477
    %507 = vmatpush.msra.mxu0 %v475
    %508 = vmatpush.msra.mxu0 %v473
    %509 = vmatpush.msra.mxu0 %v471
    %510 = vmatpush.msra.mxu0 %v469
    %511 = vmatpush.msra.mxu0 %v467
    %512 = vmatpush.msra.mxu0 %v465
    %513 = vmatmul.f32.gmra.mxu0 %v460
    %v514 = vpop.f32.mrf.mxu0
    %v515 = vadd.f32 0.0, %v514
    %516 = vmatmul.f32.gmra.mxu0 %v463
    %v517 = vpop.f32.mrf.mxu0
    %v518 = vadd.f32 0.0, %v517
    %519 = vdwg.mxu0
    %520 = vmatpush.msra.mxu0 %v496
    %521 = vmatpush.msra.mxu0 %v494
    %522 = vmatpush.msra.mxu0 %v492
    %523 = vmatpush.msra.mxu0 %v490
    %524 = vmatpush.msra.mxu0 %v488
    %525 = vmatpush.msra.mxu0 %v486
    %526 = vmatpush.msra.mxu0 %v484
    %527 = vmatpush.msra.mxu0 %v482
    %528 = vmatpush.msra.mxu0 %v480
    %529 = vmatpush.msra.mxu0 %v478
    %530 = vmatpush.msra.mxu0 %v476
    %531 = vmatpush.msra.mxu0 %v474
    %532 = vmatpush.msra.mxu0 %v472
    %533 = vmatpush.msra.mxu0 %v470
    %534 = vmatpush.msra.mxu0 %v468
    %535 = vmatpush.msra.mxu0 %v466
    %536 = vmatmul.f32.gmra.mxu0 %v460
    %v537 = vpop.f32.mrf.mxu0
    %v538 = vadd.f32 0.0, %v537
    %539 = vmatmul.f32.gmra.mxu0 %v463
    %v540 = vpop.f32.mrf.mxu0
    %v541 = vadd.f32 0.0, %v540
    %542 = vdwg.mxu0
    %v543 = vld [vmem:[#allocation29] sm:$0xff]
    %v544 = vld [vmem:[#allocation29 + $0x8] sm:$0xff]
    %v545 = vadd.f32 %v543, %v538
    %v546 = vadd.f32 %v544, %v541
    %547 = vst [vmem:[#allocation29] sm:$0xff] %v545
    %548 = vst [vmem:[#allocation29 + $0x8] sm:$0xff] %v546
    %v549 = vsub.f32 %v336, %v515
    %v550 = vsub.f32 %v337, %v518
    %v551 = vld [vmem:[#allocation11] sm:$0xff]
    %v552 = vld [vmem:[#allocation11 + $0x8] sm:$0xff]
    %v553 = vld [vmem:[#allocation11 + $0x10] sm:$0xff]
    %v554 = vld [vmem:[#allocation11 + $0x18] sm:$0xff]
    %v555 = vld [vmem:[#allocation11 + $0x20] sm:$0xff]
    %v556 = vld [vmem:[#allocation11 + $0x28] sm:$0xff]
    %v557 = vld [vmem:[#allocation11 + $0x30] sm:$0xff]
    %v558 = vld [vmem:[#allocation11 + $0x38] sm:$0xff]
    %v559 = vld [vmem:[#allocation11 + $0x40] sm:$0xff]
    %v560 = vld [vmem:[#allocation11 + $0x48] sm:$0xff]
    %v561 = vld [vmem:[#allocation11 + $0x50] sm:$0xff]
    %v562 = vld [vmem:[#allocation11 + $0x58] sm:$0xff]
    %v563 = vld [vmem:[#allocation11 + $0x60] sm:$0xff]
    %v564 = vld [vmem:[#allocation11 + $0x68] sm:$0xff]
    %v565 = vld [vmem:[#allocation11 + $0x70] sm:$0xff]
    %v566 = vld [vmem:[#allocation11 + $0x78] sm:$0xff]
    %v567 = vld [vmem:[%s8] sm:$0x1]
    %v568 = vperm.slane %v567, 0
    %569 = vmatpush.msra.mxu0 %v566
    %570 = vmatpush.msra.mxu0 %v565
    %571 = vmatpush.msra.mxu0 %v564
    %572 = vmatpush.msra.mxu0 %v563
    %573 = vmatpush.msra.mxu0 %v562
    %574 = vmatpush.msra.mxu0 %v561
    %575 = vmatpush.msra.mxu0 %v560
    %576 = vmatpush.msra.mxu0 %v559
    %577 = vmatpush.msra.mxu0 %v558
    %578 = vmatpush.msra.mxu0 %v557
    %579 = vmatpush.msra.mxu0 %v556
    %580 = vmatpush.msra.mxu0 %v555
    %581 = vmatpush.msra.mxu0 %v554
    %582 = vmatpush.msra.mxu0 %v553
    %583 = vmatpush.msra.mxu0 %v552
    %584 = vmatpush.msra.mxu0 %v551
    %585 = vmatmul.f32.gmra.mxu0 %v549
    %v586 = vpop.f32.mrf.mxu0
    %v587 = vadd.f32 %v568, %v586
    %588 = vmatmul.f32.gmra.mxu0 %v550
    %v589 = vpop.f32.mrf.mxu0
    %v590 = vadd.f32 %v568, %v589
    %591 = vdwg.mxu0
    %v592 = vmax.f32 %v587, 0.0
    %v593 = vmax.f32 %v590, 0.0
    %v594 = vld [vmem:[#allocation13] sm:$0xff]
    %v595 = vld [vmem:[#allocation13 + $0x8] sm:$0xff]
    %v596 = vld [vmem:[#allocation13 + $0x10] sm:$0xff]
    %v597 = vld [vmem:[#allocation13 + $0x18] sm:$0xff]
    %v598 = vld [vmem:[#allocation13 + $0x20] sm:$0xff]
    %v599 = vld [vmem:[#allocation13 + $0x28] sm:$0xff]
    %v600 = vld [vmem:[#allocation13 + $0x30] sm:$0xff]
    %v601 = vld [vmem:[#allocation13 + $0x38] sm:$0xff]
    %v602 = vld [vmem:[#allocation13 + $0x40] sm:$0xff]
    %v603 = vld [vmem:[#allocation13 + $0x48] sm:$0xff]
    %v604 = vld [vmem:[#allocation13 + $0x50] sm:$0xff]
    %v605 = vld [vmem:[#allocation13 + $0x58] sm:$0xff]
    %v606 = vld [vmem:[#allocation13 + $0x60] sm:$0xff]
    %v607 = vld [vmem:[#allocation13 + $0x68] sm:$0xff]
    %v608 = vld [vmem:[#allocation13 + $0x70] sm:$0xff]
    %v609 = vld [vmem:[#allocation13 + $0x78] sm:$0xff]
    %v610 = vld [vmem:[%s8 + $0x1] sm:$0x1]
    %v611 = vperm.slane %v610, 0
    %612 = vmatpush.msra.mxu0 %v609
    %613 = vmatpush.msra.mxu0 %v608
    %614 = vmatpush.msra.mxu0 %v607
    %615 = vmatpush.msra.mxu0 %v606
    %616 = vmatpush.msra.mxu0 %v605
    %617 = vmatpush.msra.mxu0 %v604
    %618 = vmatpush.msra.mxu0 %v603
    %619 = vmatpush.msra.mxu0 %v602
    %620 = vmatpush.msra.mxu0 %v601
    %621 = vmatpush.msra.mxu0 %v600
    %622 = vmatpush.msra.mxu0 %v599
    %623 = vmatpush.msra.mxu0 %v598
    %624 = vmatpush.msra.mxu0 %v597
    %625 = vmatpush.msra.mxu0 %v596
    %626 = vmatpush.msra.mxu0 %v595
    %627 = vmatpush.msra.mxu0 %v594
    %628 = vmatmul.f32.gmra.mxu0 %v592
    %v629 = vpop.f32.mrf.mxu0
    %v630 = vadd.f32 %v611, %v629
    %631 = vmatmul.f32.gmra.mxu0 %v593
    %v632 = vpop.f32.mrf.mxu0
    %v633 = vadd.f32 %v611, %v632
    %634 = vdwg.mxu0
    %v635 = vmax.f32 %v630, 0.0
    %v636 = vmax.f32 %v633, 0.0
    %v637 = vld [vmem:[#allocation14] sm:$0xff]
    %v638 = vld [vmem:[#allocation14 + $0x8] sm:$0xff]
    %v639 = vld [vmem:[#allocation14 + $0x10] sm:$0xff]
    %v640 = vld [vmem:[#allocation14 + $0x18] sm:$0xff]
    %v641 = vld [vmem:[#allocation14 + $0x20] sm:$0xff]
    %v642 = vld [vmem:[#allocation14 + $0x28] sm:$0xff]
    %v643 = vld [vmem:[#allocation14 + $0x30] sm:$0xff]
    %v644 = vld [vmem:[#allocation14 + $0x38] sm:$0xff]
    %v645 = vld [vmem:[#allocation14 + $0x40] sm:$0xff]
    %v646 = vld [vmem:[#allocation14 + $0x48] sm:$0xff]
    %v647 = vld [vmem:[#allocation14 + $0x50] sm:$0xff]
    %v648 = vld [vmem:[#allocation14 + $0x58] sm:$0xff]
    %v649 = vld [vmem:[#allocation14 + $0x60] sm:$0xff]
    %v650 = vld [vmem:[#allocation14 + $0x68] sm:$0xff]
    %v651 = vld [vmem:[#allocation14 + $0x70] sm:$0xff]
    %v652 = vld [vmem:[#allocation14 + $0x78] sm:$0xff]
    %653 = vmatpush.msra.mxu0 %v652
    %654 = vmatpush.msra.mxu0 %v651
    %655 = vmatpush.msra.mxu0 %v650
    %656 = vmatpush.msra.mxu0 %v649
    %657 = vmatpush.msra.mxu0 %v648
    %658 = vmatpush.msra.mxu0 %v647
    %659 = vmatpush.msra.mxu0 %v646
    %660 = vmatpush.msra.mxu0 %v645
    %661 = vmatpush.msra.mxu0 %v644
    %662 = vmatpush.msra.mxu0 %v643
    %663 = vmatpush.msra.mxu0 %v642
    %664 = vmatpush.msra.mxu0 %v641
    %665 = vmatpush.msra.mxu0 %v640
    %666 = vmatpush.msra.mxu0 %v639
    %667 = vmatpush.msra.mxu0 %v638
    %668 = vmatpush.msra.mxu0 %v637
    %669 = vmatmul.f32.gmra.mxu0 %v635
    %v670 = vpop.f32.mrf.mxu0
    %v671 = vadd.f32 0.0, %v670
    %672 = vmatmul.f32.gmra.mxu0 %v636
    %v673 = vpop.f32.mrf.mxu0
    %v674 = vadd.f32 0.0, %v673
    %675 = vdwg.mxu0
    %v676 = vld [vmem:[#allocation16] sm:$0xff]
    %v677 = vld [vmem:[#allocation16 + $0x8] sm:$0xff]
    %v678 = vld [vmem:[#allocation16 + $0x10] sm:$0xff]
    %v679 = vld [vmem:[#allocation16 + $0x18] sm:$0xff]
    %v680 = vld [vmem:[#allocation16 + $0x20] sm:$0xff]
    %v681 = vld [vmem:[#allocation16 + $0x28] sm:$0xff]
    %v682 = vld [vmem:[#allocation16 + $0x30] sm:$0xff]
    %v683 = vld [vmem:[#allocation16 + $0x38] sm:$0xff]
    %v684 = vld [vmem:[#allocation16 + $0x40] sm:$0xff]
    %v685 = vld [vmem:[#allocation16 + $0x48] sm:$0xff]
    %v686 = vld [vmem:[#allocation16 + $0x50] sm:$0xff]
    %v687 = vld [vmem:[#allocation16 + $0x58] sm:$0xff]
    %v688 = vld [vmem:[#allocation16 + $0x60] sm:$0xff]
    %v689 = vld [vmem:[#allocation16 + $0x68] sm:$0xff]
    %v690 = vld [vmem:[#allocation16 + $0x70] sm:$0xff]
    %v691 = vld [vmem:[#allocation16 + $0x78] sm:$0xff]
    %v692 = vld [vmem:[#allocation16 + $0x80] sm:$0xff]
    %v693 = vld [vmem:[#allocation16 + $0x88] sm:$0xff]
    %v694 = vld [vmem:[#allocation16 + $0x90] sm:$0xff]
    %v695 = vld [vmem:[#allocation16 + $0x98] sm:$0xff]
    %v696 = vld [vmem:[#allocation16 + $0xa0] sm:$0xff]
    %v697 = vld [vmem:[#allocation16 + $0xa8] sm:$0xff]
    %v698 = vld [vmem:[#allocation16 + $0xb0] sm:$0xff]
    %v699 = vld [vmem:[#allocation16 + $0xb8] sm:$0xff]
    %v700 = vld [vmem:[#allocation16 + $0xc0] sm:$0xff]
    %v701 = vld [vmem:[#allocation16 + $0xc8] sm:$0xff]
    %v702 = vld [vmem:[#allocation16 + $0xd0] sm:$0xff]
    %v703 = vld [vmem:[#allocation16 + $0xd8] sm:$0xff]
    %v704 = vld [vmem:[#allocation16 + $0xe0] sm:$0xff]
    %v705 = vld [vmem:[#allocation16 + $0xe8] sm:$0xff]
    %v706 = vld [vmem:[#allocation16 + $0xf0] sm:$0xff]
    %v707 = vld [vmem:[#allocation16 + $0xf8] sm:$0xff]
    %708 = vmatpush.msra.mxu0 %v706
    %709 = vmatpush.msra.mxu0 %v704
    %710 = vmatpush.msra.mxu0 %v702
    %711 = vmatpush.msra.mxu0 %v700
    %712 = vmatpush.msra.mxu0 %v698
    %713 = vmatpush.msra.mxu0 %v696
    %714 = vmatpush.msra.mxu0 %v694
    %715 = vmatpush.msra.mxu0 %v692
    %716 = vmatpush.msra.mxu0 %v690
    %717 = vmatpush.msra.mxu0 %v688
    %718 = vmatpush.msra.mxu0 %v686
    %719 = vmatpush.msra.mxu0 %v684
    %720 = vmatpush.msra.mxu0 %v682
    %721 = vmatpush.msra.mxu0 %v680
    %722 = vmatpush.msra.mxu0 %v678
    %723 = vmatpush.msra.mxu0 %v676
    %724 = vmatmul.f32.gmra.mxu0 %v671
    %v725 = vpop.f32.mrf.mxu0
    %v726 = vadd.f32 0.0, %v725
    %727 = vmatmul.f32.gmra.mxu0 %v674
    %v728 = vpop.f32.mrf.mxu0
    %v729 = vadd.f32 0.0, %v728
    %730 = vdwg.mxu0
    %731 = vmatpush.msra.mxu0 %v707
    %732 = vmatpush.msra.mxu0 %v705
    %733 = vmatpush.msra.mxu0 %v703
    %734 = vmatpush.msra.mxu0 %v701
    %735 = vmatpush.msra.mxu0 %v699
    %736 = vmatpush.msra.mxu0 %v697
    %737 = vmatpush.msra.mxu0 %v695
    %738 = vmatpush.msra.mxu0 %v693
    %739 = vmatpush.msra.mxu0 %v691
    %740 = vmatpush.msra.mxu0 %v689
    %741 = vmatpush.msra.mxu0 %v687
    %742 = vmatpush.msra.mxu0 %v685
    %743 = vmatpush.msra.mxu0 %v683
    %744 = vmatpush.msra.mxu0 %v681
    %745 = vmatpush.msra.mxu0 %v679
    %746 = vmatpush.msra.mxu0 %v677
    %747 = vmatmul.f32.gmra.mxu0 %v671
    %v748 = vpop.f32.mrf.mxu0
    %v749 = vadd.f32 0.0, %v748
    %750 = vmatmul.f32.gmra.mxu0 %v674
    %v751 = vpop.f32.mrf.mxu0
    %v752 = vadd.f32 0.0, %v751
    %753 = vdwg.mxu0
    %v754 = vld [vmem:[#allocation29] sm:$0xff]
    %v755 = vld [vmem:[#allocation29 + $0x8] sm:$0xff]
    %v756 = vadd.f32 %v754, %v749
    %v757 = vadd.f32 %v755, %v752
    %758 = vst [vmem:[#allocation29] sm:$0xff] %v756
    %759 = vst [vmem:[#allocation29 + $0x8] sm:$0xff] %v757
    %v760 = vsub.f32 %v549, %v726
    %v761 = vsub.f32 %v550, %v729
    %v762 = vld [vmem:[#allocation17] sm:$0xff]
    %v763 = vld [vmem:[#allocation17 + $0x8] sm:$0xff]
    %v764 = vld [vmem:[#allocation17 + $0x10] sm:$0xff]
    %v765 = vld [vmem:[#allocation17 + $0x18] sm:$0xff]
    %v766 = vld [vmem:[#allocation17 + $0x20] sm:$0xff]
    %v767 = vld [vmem:[#allocation17 + $0x28] sm:$0xff]
    %v768 = vld [vmem:[#allocation17 + $0x30] sm:$0xff]
    %v769 = vld [vmem:[#allocation17 + $0x38] sm:$0xff]
    %v770 = vld [vmem:[#allocation17 + $0x40] sm:$0xff]
    %v771 = vld [vmem:[#allocation17 + $0x48] sm:$0xff]
    %v772 = vld [vmem:[#allocation17 + $0x50] sm:$0xff]
    %v773 = vld [vmem:[#allocation17 + $0x58] sm:$0xff]
    %v774 = vld [vmem:[#allocation17 + $0x60] sm:$0xff]
    %v775 = vld [vmem:[#allocation17 + $0x68] sm:$0xff]
    %v776 = vld [vmem:[#allocation17 + $0x70] sm:$0xff]
    %v777 = vld [vmem:[#allocation17 + $0x78] sm:$0xff]
    %v778 = vld [vmem:[%s13] sm:$0x1]
    %v779 = vperm.slane %v778, 0
    %780 = vmatpush.msra.mxu0 %v777
    %781 = vmatpush.msra.mxu0 %v776
    %782 = vmatpush.msra.mxu0 %v775
    %783 = vmatpush.msra.mxu0 %v774
    %784 = vmatpush.msra.mxu0 %v773
    %785 = vmatpush.msra.mxu0 %v772
    %786 = vmatpush.msra.mxu0 %v771
    %787 = vmatpush.msra.mxu0 %v770
    %788 = vmatpush.msra.mxu0 %v769
    %789 = vmatpush.msra.mxu0 %v768
    %790 = vmatpush.msra.mxu0 %v767
    %791 = vmatpush.msra.mxu0 %v766
    %792 = vmatpush.msra.mxu0 %v765
    %793 = vmatpush.msra.mxu0 %v764
    %794 = vmatpush.msra.mxu0 %v763
    %795 = vmatpush.msra.mxu0 %v762
    %796 = vmatmul.f32.gmra.mxu0 %v760
    %v797 = vpop.f32.mrf.mxu0
    %v798 = vadd.f32 %v779, %v797
    %799 = vmatmul.f32.gmra.mxu0 %v761
    %v800 = vpop.f32.mrf.mxu0
    %v801 = vadd.f32 %v779, %v800
    %802 = vdwg.mxu0
    %v803 = vmax.f32 %v798, 0.0
    %v804 = vmax.f32 %v801, 0.0
    %v805 = vld [vmem:[#allocation19] sm:$0xff]
    %v806 = vld [vmem:[#allocation19 + $0x8] sm:$0xff]
    %v807 = vld [vmem:[#allocation19 + $0x10] sm:$0xff]
    %v808 = vld [vmem:[#allocation19 + $0x18] sm:$0xff]
    %v809 = vld [vmem:[#allocation19 + $0x20] sm:$0xff]
    %v810 = vld [vmem:[#allocation19 + $0x28] sm:$0xff]
    %v811 = vld [vmem:[#allocation19 + $0x30] sm:$0xff]
    %v812 = vld [vmem:[#allocation19 + $0x38] sm:$0xff]
    %v813 = vld [vmem:[#allocation19 + $0x40] sm:$0xff]
    %v814 = vld [vmem:[#allocation19 + $0x48] sm:$0xff]
    %v815 = vld [vmem:[#allocation19 + $0x50] sm:$0xff]
    %v816 = vld [vmem:[#allocation19 + $0x58] sm:$0xff]
    %v817 = vld [vmem:[#allocation19 + $0x60] sm:$0xff]
    %v818 = vld [vmem:[#allocation19 + $0x68] sm:$0xff]
    %v819 = vld [vmem:[#allocation19 + $0x70] sm:$0xff]
    %v820 = vld [vmem:[#allocation19 + $0x78] sm:$0xff]
    %v821 = vld [vmem:[%s13 + $0x1] sm:$0x1]
    %v822 = vperm.slane %v821, 0
    %823 = vmatpush.msra.mxu0 %v820
    %824 = vmatpush.msra.mxu0 %v819
    %825 = vmatpush.msra.mxu0 %v818
    %826 = vmatpush.msra.mxu0 %v817
    %827 = vmatpush.msra.mxu0 %v816
    %828 = vmatpush.msra.mxu0 %v815
    %829 = vmatpush.msra.mxu0 %v814
    %830 = vmatpush.msra.mxu0 %v813
    %831 = vmatpush.msra.mxu0 %v812
    %832 = vmatpush.msra.mxu0 %v811
    %833 = vmatpush.msra.mxu0 %v810
    %834 = vmatpush.msra.mxu0 %v809
    %835 = vmatpush.msra.mxu0 %v808
    %836 = vmatpush.msra.mxu0 %v807
    %837 = vmatpush.msra.mxu0 %v806
    %838 = vmatpush.msra.mxu0 %v805
    %839 = vmatmul.f32.gmra.mxu0 %v803
    %v840 = vpop.f32.mrf.mxu0
    %v841 = vadd.f32 %v822, %v840
    %842 = vmatmul.f32.gmra.mxu0 %v804
    %v843 = vpop.f32.mrf.mxu0
    %v844 = vadd.f32 %v822, %v843
    %845 = vdwg.mxu0
    %v846 = vmax.f32 %v841, 0.0
    %v847 = vmax.f32 %v844, 0.0
    %v848 = vld [vmem:[#allocation20] sm:$0xff]
    %v849 = vld [vmem:[#allocation20 + $0x8] sm:$0xff]
    %v850 = vld [vmem:[#allocation20 + $0x10] sm:$0xff]
    %v851 = vld [vmem:[#allocation20 + $0x18] sm:$0xff]
    %v852 = vld [vmem:[#allocation20 + $0x20] sm:$0xff]
    %v853 = vld [vmem:[#allocation20 + $0x28] sm:$0xff]
    %v854 = vld [vmem:[#allocation20 + $0x30] sm:$0xff]
    %v855 = vld [vmem:[#allocation20 + $0x38] sm:$0xff]
    %v856 = vld [vmem:[#allocation20 + $0x40] sm:$0xff]
    %v857 = vld [vmem:[#allocation20 + $0x48] sm:$0xff]
    %v858 = vld [vmem:[#allocation20 + $0x50] sm:$0xff]
    %v859 = vld [vmem:[#allocation20 + $0x58] sm:$0xff]
    %v860 = vld [vmem:[#allocation20 + $0x60] sm:$0xff]
    %v861 = vld [vmem:[#allocation20 + $0x68] sm:$0xff]
    %v862 = vld [vmem:[#allocation20 + $0x70] sm:$0xff]
    %v863 = vld [vmem:[#allocation20 + $0x78] sm:$0xff]
    %864 = vmatpush.msra.mxu0 %v863
    %865 = vmatpush.msra.mxu0 %v862
    %866 = vmatpush.msra.mxu0 %v861
    %867 = vmatpush.msra.mxu0 %v860
    %868 = vmatpush.msra.mxu0 %v859
    %869 = vmatpush.msra.mxu0 %v858
    %870 = vmatpush.msra.mxu0 %v857
    %871 = vmatpush.msra.mxu0 %v856
    %872 = vmatpush.msra.mxu0 %v855
    %873 = vmatpush.msra.mxu0 %v854
    %874 = vmatpush.msra.mxu0 %v853
    %875 = vmatpush.msra.mxu0 %v852
    %876 = vmatpush.msra.mxu0 %v851
    %877 = vmatpush.msra.mxu0 %v850
    %878 = vmatpush.msra.mxu0 %v849
    %879 = vmatpush.msra.mxu0 %v848
    %880 = vmatmul.f32.gmra.mxu0 %v846
    %v881 = vpop.f32.mrf.mxu0
    %v882 = vadd.f32 0.0, %v881
    %883 = vmatmul.f32.gmra.mxu0 %v847
    %v884 = vpop.f32.mrf.mxu0
    %v885 = vadd.f32 0.0, %v884
    %886 = vdwg.mxu0
    %v887 = vld [vmem:[#allocation22] sm:$0xff]
    %v888 = vld [vmem:[#allocation22 + $0x8] sm:$0xff]
    %v889 = vld [vmem:[#allocation22 + $0x10] sm:$0xff]
    %v890 = vld [vmem:[#allocation22 + $0x18] sm:$0xff]
    %v891 = vld [vmem:[#allocation22 + $0x20] sm:$0xff]
    %v892 = vld [vmem:[#allocation22 + $0x28] sm:$0xff]
    %v893 = vld [vmem:[#allocation22 + $0x30] sm:$0xff]
    %v894 = vld [vmem:[#allocation22 + $0x38] sm:$0xff]
    %v895 = vld [vmem:[#allocation22 + $0x40] sm:$0xff]
    %v896 = vld [vmem:[#allocation22 + $0x48] sm:$0xff]
    %v897 = vld [vmem:[#allocation22 + $0x50] sm:$0xff]
    %v898 = vld [vmem:[#allocation22 + $0x58] sm:$0xff]
    %v899 = vld [vmem:[#allocation22 + $0x60] sm:$0xff]
    %v900 = vld [vmem:[#allocation22 + $0x68] sm:$0xff]
    %v901 = vld [vmem:[#allocation22 + $0x70] sm:$0xff]
    %v902 = vld [vmem:[#allocation22 + $0x78] sm:$0xff]
    %v903 = vld [vmem:[#allocation22 + $0x80] sm:$0xff]
    %v904 = vld [vmem:[#allocation22 + $0x88] sm:$0xff]
    %v905 = vld [vmem:[#allocation22 + $0x90] sm:$0xff]
    %v906 = vld [vmem:[#allocation22 + $0x98] sm:$0xff]
    %v907 = vld [vmem:[#allocation22 + $0xa0] sm:$0xff]
    %v908 = vld [vmem:[#allocation22 + $0xa8] sm:$0xff]
    %v909 = vld [vmem:[#allocation22 + $0xb0] sm:$0xff]
    %v910 = vld [vmem:[#allocation22 + $0xb8] sm:$0xff]
    %v911 = vld [vmem:[#allocation22 + $0xc0] sm:$0xff]
    %v912 = vld [vmem:[#allocation22 + $0xc8] sm:$0xff]
    %v913 = vld [vmem:[#allocation22 + $0xd0] sm:$0xff]
    %v914 = vld [vmem:[#allocation22 + $0xd8] sm:$0xff]
    %v915 = vld [vmem:[#allocation22 + $0xe0] sm:$0xff]
    %v916 = vld [vmem:[#allocation22 + $0xe8] sm:$0xff]
    %v917 = vld [vmem:[#allocation22 + $0xf0] sm:$0xff]
    %v918 = vld [vmem:[#allocation22 + $0xf8] sm:$0xff]
    %919 = vmatpush.msra.mxu0 %v917
    %920 = vmatpush.msra.mxu0 %v915
    %921 = vmatpush.msra.mxu0 %v913
    %922 = vmatpush.msra.mxu0 %v911
    %923 = vmatpush.msra.mxu0 %v909
    %924 = vmatpush.msra.mxu0 %v907
    %925 = vmatpush.msra.mxu0 %v905
    %926 = vmatpush.msra.mxu0 %v903
    %927 = vmatpush.msra.mxu0 %v901
    %928 = vmatpush.msra.mxu0 %v899
    %929 = vmatpush.msra.mxu0 %v897
    %930 = vmatpush.msra.mxu0 %v895
    %931 = vmatpush.msra.mxu0 %v893
    %932 = vmatpush.msra.mxu0 %v891
    %933 = vmatpush.msra.mxu0 %v889
    %934 = vmatpush.msra.mxu0 %v887
    %935 = vmatmul.f32.gmra.mxu0 %v882
    %v936 = vpop.f32.mrf.mxu0
    %v937 = vadd.f32 0.0, %v936
    %938 = vmatmul.f32.gmra.mxu0 %v885
    %v939 = vpop.f32.mrf.mxu0
    %v940 = vadd.f32 0.0, %v939
    %941 = vdwg.mxu0
    %942 = vmatpush.msra.mxu0 %v918
    %943 = vmatpush.msra.mxu0 %v916
    %944 = vmatpush.msra.mxu0 %v914
    %945 = vmatpush.msra.mxu0 %v912
    %946 = vmatpush.msra.mxu0 %v910
    %947 = vmatpush.msra.mxu0 %v908
    %948 = vmatpush.msra.mxu0 %v906
    %949 = vmatpush.msra.mxu0 %v904
    %950 = vmatpush.msra.mxu0 %v902
    %951 = vmatpush.msra.mxu0 %v900
    %952 = vmatpush.msra.mxu0 %v898
    %953 = vmatpush.msra.mxu0 %v896
    %954 = vmatpush.msra.mxu0 %v894
    %955 = vmatpush.msra.mxu0 %v892
    %956 = vmatpush.msra.mxu0 %v890
    %957 = vmatpush.msra.mxu0 %v888
    %958 = vmatmul.f32.gmra.mxu0 %v882
    %v959 = vpop.f32.mrf.mxu0
    %v960 = vadd.f32 0.0, %v959
    %961 = vmatmul.f32.gmra.mxu0 %v885
    %v962 = vpop.f32.mrf.mxu0
    %v963 = vadd.f32 0.0, %v962
    %964 = vdwg.mxu0
    %v965 = vld [vmem:[#allocation29] sm:$0xff]
    %v966 = vld [vmem:[#allocation29 + $0x8] sm:$0xff]
    %v967 = vadd.f32 %v965, %v960
    %v968 = vadd.f32 %v966, %v963
    %969 = vst [vmem:[#allocation29] sm:$0xff] %v967
    %970 = vst [vmem:[#allocation29 + $0x8] sm:$0xff] %v968
    %v971 = vsub.f32 %v760, %v937
    %v972 = vsub.f32 %v761, %v940
    %v973 = vld [vmem:[#allocation23] sm:$0xff]
    %v974 = vld [vmem:[#allocation23 + $0x8] sm:$0xff]
    %v975 = vld [vmem:[#allocation23 + $0x10] sm:$0xff]
    %v976 = vld [vmem:[#allocation23 + $0x18] sm:$0xff]
    %v977 = vld [vmem:[#allocation23 + $0x20] sm:$0xff]
    %v978 = vld [vmem:[#allocation23 + $0x28] sm:$0xff]
    %v979 = vld [vmem:[#allocation23 + $0x30] sm:$0xff]
    %v980 = vld [vmem:[#allocation23 + $0x38] sm:$0xff]
    %v981 = vld [vmem:[#allocation23 + $0x40] sm:$0xff]
    %v982 = vld [vmem:[#allocation23 + $0x48] sm:$0xff]
    %v983 = vld [vmem:[#allocation23 + $0x50] sm:$0xff]
    %v984 = vld [vmem:[#allocation23 + $0x58] sm:$0xff]
    %v985 = vld [vmem:[#allocation23 + $0x60] sm:$0xff]
    %v986 = vld [vmem:[#allocation23 + $0x68] sm:$0xff]
    %v987 = vld [vmem:[#allocation23 + $0x70] sm:$0xff]
    %v988 = vld [vmem:[#allocation23 + $0x78] sm:$0xff]
    %v989 = vld [vmem:[%s18] sm:$0x1]
    %v990 = vperm.slane %v989, 0
    %991 = vmatpush.msra.mxu0 %v988
    %992 = vmatpush.msra.mxu0 %v987
    %993 = vmatpush.msra.mxu0 %v986
    %994 = vmatpush.msra.mxu0 %v985
    %995 = vmatpush.msra.mxu0 %v984
    %996 = vmatpush.msra.mxu0 %v983
    %997 = vmatpush.msra.mxu0 %v982
    %998 = vmatpush.msra.mxu0 %v981
    %999 = vmatpush.msra.mxu0 %v980
    %1000 = vmatpush.msra.mxu0 %v979
    %1001 = vmatpush.msra.mxu0 %v978
    %1002 = vmatpush.msra.mxu0 %v977
    %1003 = vmatpush.msra.mxu0 %v976
    %1004 = vmatpush.msra.mxu0 %v975
    %1005 = vmatpush.msra.mxu0 %v974
    %1006 = vmatpush.msra.mxu0 %v973
    %1007 = vmatmul.f32.gmra.mxu0 %v971
    %v1008 = vpop.f32.mrf.mxu0
    %v1009 = vadd.f32 %v990, %v1008
    %1010 = vmatmul.f32.gmra.mxu0 %v972
    %v1011 = vpop.f32.mrf.mxu0
    %v1012 = vadd.f32 %v990, %v1011
    %1013 = vdwg.mxu0
    %v1014 = vmax.f32 %v1009, 0.0
    %v1015 = vmax.f32 %v1012, 0.0
    %v1016 = vld [vmem:[#allocation25] sm:$0xff]
    %v1017 = vld [vmem:[#allocation25 + $0x8] sm:$0xff]
    %v1018 = vld [vmem:[#allocation25 + $0x10] sm:$0xff]
    %v1019 = vld [vmem:[#allocation25 + $0x18] sm:$0xff]
    %v1020 = vld [vmem:[#allocation25 + $0x20] sm:$0xff]
    %v1021 = vld [vmem:[#allocation25 + $0x28] sm:$0xff]
    %v1022 = vld [vmem:[#allocation25 + $0x30] sm:$0xff]
    %v1023 = vld [vmem:[#allocation25 + $0x38] sm:$0xff]
    %v1024 = vld [vmem:[#allocation25 + $0x40] sm:$0xff]
    %v1025 = vld [vmem:[#allocation25 + $0x48] sm:$0xff]
    %v1026 = vld [vmem:[#allocation25 + $0x50] sm:$0xff]
    %v1027 = vld [vmem:[#allocation25 + $0x58] sm:$0xff]
    %v1028 = vld [vmem:[#allocation25 + $0x60] sm:$0xff]
    %v1029 = vld [vmem:[#allocation25 + $0x68] sm:$0xff]
    %v1030 = vld [vmem:[#allocation25 + $0x70] sm:$0xff]
    %v1031 = vld [vmem:[#allocation25 + $0x78] sm:$0xff]
    %v1032 = vld [vmem:[%s18 + $0x1] sm:$0x1]
    %v1033 = vperm.slane %v1032, 0
    %1034 = vmatpush.msra.mxu0 %v1031
    %1035 = vmatpush.msra.mxu0 %v1030
    %1036 = vmatpush.msra.mxu0 %v1029
    %1037 = vmatpush.msra.mxu0 %v1028
    %1038 = vmatpush.msra.mxu0 %v1027
    %1039 = vmatpush.msra.mxu0 %v1026
    %1040 = vmatpush.msra.mxu0 %v1025
    %1041 = vmatpush.msra.mxu0 %v1024
    %1042 = vmatpush.msra.mxu0 %v1023
    %1043 = vmatpush.msra.mxu0 %v1022
    %1044 = vmatpush.msra.mxu0 %v1021
    %1045 = vmatpush.msra.mxu0 %v1020
    %1046 = vmatpush.msra.mxu0 %v1019
    %1047 = vmatpush.msra.mxu0 %v1018
    %1048 = vmatpush.msra.mxu0 %v1017
    %1049 = vmatpush.msra.mxu0 %v1016
    %1050 = vmatmul.f32.gmra.mxu0 %v1014
    %v1051 = vpop.f32.mrf.mxu0
    %v1052 = vadd.f32 %v1033, %v1051
    %1053 = vmatmul.f32.gmra.mxu0 %v1015
    %v1054 = vpop.f32.mrf.mxu0
    %v1055 = vadd.f32 %v1033, %v1054
    %1056 = vdwg.mxu0
    %v1057 = vmax.f32 %v1052, 0.0
    %v1058 = vmax.f32 %v1055, 0.0
    %v1059 = vld [vmem:[#allocation26] sm:$0xff]
    %v1060 = vld [vmem:[#allocation26 + $0x8] sm:$0xff]
    %v1061 = vld [vmem:[#allocation26 + $0x10] sm:$0xff]
    %v1062 = vld [vmem:[#allocation26 + $0x18] sm:$0xff]
    %v1063 = vld [vmem:[#allocation26 + $0x20] sm:$0xff]
    %v1064 = vld [vmem:[#allocation26 + $0x28] sm:$0xff]
    %v1065 = vld [vmem:[#allocation26 + $0x30] sm:$0xff]
    %v1066 = vld [vmem:[#allocation26 + $0x38] sm:$0xff]
    %v1067 = vld [vmem:[#allocation26 + $0x40] sm:$0xff]
    %v1068 = vld [vmem:[#allocation26 + $0x48] sm:$0xff]
    %v1069 = vld [vmem:[#allocation26 + $0x50] sm:$0xff]
    %v1070 = vld [vmem:[#allocation26 + $0x58] sm:$0xff]
    %v1071 = vld [vmem:[#allocation26 + $0x60] sm:$0xff]
    %v1072 = vld [vmem:[#allocation26 + $0x68] sm:$0xff]
    %v1073 = vld [vmem:[#allocation26 + $0x70] sm:$0xff]
    %v1074 = vld [vmem:[#allocation26 + $0x78] sm:$0xff]
    %1075 = vmatpush.msra.mxu0 %v1074
    %1076 = vmatpush.msra.mxu0 %v1073
    %1077 = vmatpush.msra.mxu0 %v1072
    %1078 = vmatpush.msra.mxu0 %v1071
    %1079 = vmatpush.msra.mxu0 %v1070
    %1080 = vmatpush.msra.mxu0 %v1069
    %1081 = vmatpush.msra.mxu0 %v1068
    %1082 = vmatpush.msra.mxu0 %v1067
    %1083 = vmatpush.msra.mxu0 %v1066
    %1084 = vmatpush.msra.mxu0 %v1065
    %1085 = vmatpush.msra.mxu0 %v1064
    %1086 = vmatpush.msra.mxu0 %v1063
    %1087 = vmatpush.msra.mxu0 %v1062
    %1088 = vmatpush.msra.mxu0 %v1061
    %1089 = vmatpush.msra.mxu0 %v1060
    %1090 = vmatpush.msra.mxu0 %v1059
    %1091 = vmatmul.f32.gmra.mxu0 %v1057
    %v1092 = vpop.f32.mrf.mxu0
    %v1093 = vadd.f32 0.0, %v1092
    %1094 = vmatmul.f32.gmra.mxu0 %v1058
    %v1095 = vpop.f32.mrf.mxu0
    %v1096 = vadd.f32 0.0, %v1095
    %1097 = vdwg.mxu0
    %v1098 = vmax.f32 %v1093, 0.0
    %v1099 = vmax.f32 %v1096, 0.0
    %v1100 = vld [vmem:[#allocation28 + $0x8] sm:$0xff]
    %v1101 = vld [vmem:[#allocation28 + $0x18] sm:$0xff]
    %v1102 = vld [vmem:[#allocation28 + $0x28] sm:$0xff]
    %v1103 = vld [vmem:[#allocation28 + $0x38] sm:$0xff]
    %v1104 = vld [vmem:[#allocation28 + $0x48] sm:$0xff]
    %v1105 = vld [vmem:[#allocation28 + $0x58] sm:$0xff]
    %v1106 = vld [vmem:[#allocation28 + $0x68] sm:$0xff]
    %v1107 = vld [vmem:[#allocation28 + $0x78] sm:$0xff]
    %v1108 = vld [vmem:[#allocation28 + $0x88] sm:$0xff]
    %v1109 = vld [vmem:[#allocation28 + $0x98] sm:$0xff]
    %v1110 = vld [vmem:[#allocation28 + $0xa8] sm:$0xff]
    %v1111 = vld [vmem:[#allocation28 + $0xb8] sm:$0xff]
    %v1112 = vld [vmem:[#allocation28 + $0xc8] sm:$0xff]
    %v1113 = vld [vmem:[#allocation28 + $0xd8] sm:$0xff]
    %v1114 = vld [vmem:[#allocation28 + $0xe8] sm:$0xff]
    %v1115 = vld [vmem:[#allocation28 + $0xf8] sm:$0xff]
    %v1116 = vld [vmem:[%s21] sm:$0x3]
    %v1118 = vperm.slane %v1116, 1
    %1120 = vmatpush.msra.mxu0 %v1115
    %1121 = vmatpush.msra.mxu0 %v1114
    %1122 = vmatpush.msra.mxu0 %v1113
    %1123 = vmatpush.msra.mxu0 %v1112
    %1124 = vmatpush.msra.mxu0 %v1111
    %1125 = vmatpush.msra.mxu0 %v1110
    %1126 = vmatpush.msra.mxu0 %v1109
    %1127 = vmatpush.msra.mxu0 %v1108
    %1128 = vmatpush.msra.mxu0 %v1107
    %1129 = vmatpush.msra.mxu0 %v1106
    %1130 = vmatpush.msra.mxu0 %v1105
    %1131 = vmatpush.msra.mxu0 %v1104
    %1132 = vmatpush.msra.mxu0 %v1103
    %1133 = vmatpush.msra.mxu0 %v1102
    %1134 = vmatpush.msra.mxu0 %v1101
    %1135 = vmatpush.msra.mxu0 %v1100
    %1136 = vmatmul.f32.gmra.mxu0 %v1098
    %v1137 = vpop.f32.mrf.mxu0
    %v1138 = vadd.f32 %v1118, %v1137
    %1139 = vmatmul.f32.gmra.mxu0 %v1099
    %v1140 = vpop.f32.mrf.mxu0
    %v1141 = vadd.f32 %v1118, %v1140
    %1142 = vdwg.mxu0
    %v1143 = vld [vmem:[#allocation29] sm:$0xff]
    %v1144 = vld [vmem:[#allocation29 + $0x8] sm:$0xff]
    %v1145 = vadd.f32 %v1143, %v1138
    %v1146 = vadd.f32 %v1144, %v1141
    %1147 = vst [vmem:[#allocation29] sm:$0xff] %v1145
    %1148 = vst [vmem:[#allocation29 + $0x8] sm:$0xff] %v1146
    // Predicated region
    $region158: #{tpu_custom_call.1} parent=1 // pred_check
      _
    $region159: #{tpu_custom_call.1} parent=1 // pred_check_branch
      %1150 = sbr.rel (0) target = $region161
    $region160: #{tpu_custom_call.1} parent=1 // pred_region
      %1152 = vsyncadd [#allocation4], 0
      %s1153 = sshll.u32 [#allocation29], 4
      %s1154 = int_to_ptr.vmem [resolvable:$true] %s1153
      %s1155 = sshll.u32 %s22, 4
      %s1156 = int_to_ptr.hbm [resolvable:$true] %s1155
      %1161 = dma.vmem_to_hbm [thread:$0]  %s1154, 256, %s1156, [#allocation4], 128, 128, 8
    $region161: #{tpu_custom_call.1} parent=1 // pred_fallthru
      _
    // Predicated region
    $region162: #{tpu_custom_call.1} parent=1 // pred_check
      _
    $region163: #{tpu_custom_call.1} parent=1 // pred_check_branch
      %1163 = sbr.rel (0) target = $region165
    $region164: #{tpu_custom_call.1} parent=1 // pred_region
      %1165 = dma.done [#allocation4], 256
    $region165: #{tpu_custom_call.1} parent=1 // pred_fallthru
      _
    %1166 = vsyncpa [#allocation3], 1
    %1167 = vsyncpa [#allocation6], 1
    %1168 = vsyncpa [#allocation9], 1
    %1169 = vsyncpa [#allocation12], 1
    %1170 = vsyncpa [#allocation15], 1
    %1171 = vsyncpa [#allocation18], 1
    %1172 = vsyncpa [#allocation21], 1
    %1173 = vsyncpa [#allocation24], 1
    %1174 = vsyncpa [#allocation27], 1
    %1175 = vsyncpa [#allocation4], 1

</llo_original>
